<compile_context>
chip_gen: v5e
topology: v5e:2x2
jax: 0.10.0
libtpu: 0.0.40
codegen_flags: <defaults>
</compile_context>

<pallas_src>
import functools

import jax
import jax.numpy as jnp
from jax.experimental import pallas as pl
from jax.experimental.pallas import tpu as pltpu

# MNIST autoencoder layer sizes (from the PyTorch module)
ENC_DIMS = [28 * 28, 128, 64, 32, 16, 3]
DEC_DIMS = [3, 16, 32, 64, 128, 28 * 28]
N_FEATURES = 28 * 28
LATENT = ENC_DIMS[-1]          # 3
LATENT_PAD = 128               # latent padded to one full lane group


def _round_up(x, m):
    return (x + m - 1) // m * m


def _autoencoder_kernel(
    x_ref,
    # encoder params: (W, b) x 5   (ew4/eb4 are lane-padded to 128 output cols)
    ew0, eb0, ew1, eb1, ew2, eb2, ew3, eb3, ew4, eb4,
    # decoder params: (W, b) x 5   (dw0 is row-padded to 128 input rows)
    dw0, db0, dw1, db1, dw2, db2, dw3, db3, dw4, db4,
    enc_ref, dec_ref,
):
    cdt = ew0.dtype  # MXU operand dtype (f32 or bf16); accumulation is always f32

    def dense_tanh(h, w_ref, b_ref):
        z = jnp.dot(h, w_ref[...], preferred_element_type=jnp.float32) + b_ref[...]
        return jnp.tanh(z).astype(cdt)

    # --- encoder: Linear+Tanh x4, final Linear (no activation) ---
    # x streams in whatever dtype the caller hands us (f32 normally); cast here on
    # the VPU instead of burning a separate HBM pass in the wrapper.
    h = x_ref[...].astype(cdt)
    h = dense_tanh(h, ew0, eb0)
    h = dense_tanh(h, ew1, eb1)
    h = dense_tanh(h, ew2, eb2)
    h = dense_tanh(h, ew3, eb3)
    # Columns 3..127 of ew4/eb4 are exactly zero, so enc is lane-dense (tb, 128)
    # with zeros in the padding -> unmasked store.
    enc = jnp.dot(h, ew4[...], preferred_element_type=jnp.float32) + eb4[...]
    enc_ref[...] = enc.astype(enc_ref.dtype)

    # --- decoder: Linear+Tanh x4, final Linear + Sigmoid ---
    d = enc.astype(cdt)          # rows 3..127 of dw0 are zero -> padding is inert
    d = dense_tanh(d, dw0, db0)
    d = dense_tanh(d, dw1, db1)
    d = dense_tanh(d, dw2, db2)
    d = dense_tanh(d, dw3, db3)
    logits = jnp.dot(d, dw4[...], preferred_element_type=jnp.float32) + db4[...]
    # sigmoid(x) == 0.5*tanh(0.5*x) + 0.5 : single EUP transcendental + VPU fma
    dec_ref[...] = (0.5 * jnp.tanh(0.5 * logits) + 0.5).astype(dec_ref.dtype)


def init_params(key):
    """Deterministic init mimicking torch.nn.Linear default (U[-1/sqrt(fan_in), +])."""
    params = []
    for dims in (ENC_DIMS, DEC_DIMS):
        for fan_in, fan_out in zip(dims[:-1], dims[1:]):
            key, kw, kb = jax.random.split(key, 3)
            bound = 1.0 / jnp.sqrt(fan_in)
            w = jax.random.uniform(kw, (fan_in, fan_out), jnp.float32, -bound, bound)
            b = jax.random.uniform(kb, (1, fan_out), jnp.float32, -bound, bound)
            params.append(w)
            params.append(b)
    return params  # [ew0, eb0, ..., ew4, eb4, dw0, db0, ..., dw4, db4]


def _prepare_params(params, compute_dtype):
    """Cast weights to compute_dtype (biases stay f32) and lane-pad the latent dim."""
    (ew0, eb0, ew1, eb1, ew2, eb2, ew3, eb3, ew4, eb4,
     dw0, db0, dw1, db1, dw2, db2, dw3, db3, dw4, db4) = params
    pad_c = LATENT_PAD - LATENT
    ew4 = jnp.pad(ew4, ((0, 0), (0, pad_c)))   # (16, 3) -> (16, 128)
    eb4 = jnp.pad(eb4, ((0, 0), (0, pad_c)))   # (1, 3)  -> (1, 128)
    dw0 = jnp.pad(dw0, ((0, pad_c), (0, 0)))   # (3, 16) -> (128, 16)
    ws = [ew0, ew1, ew2, ew3, ew4, dw0, dw1, dw2, dw3, dw4]
    bs = [eb0, eb1, eb2, eb3, eb4, db0, db1, db2, db3, db4]
    out = []
    for w, b in zip(ws, bs):
        out.append(w.astype(compute_dtype))
        out.append(b.astype(jnp.float32))
    return out


@functools.partial(jax.jit, static_argnames=("tile_b", "compute_dtype"))
def autoencoder_mnist(x, params, tile_b=1024, compute_dtype=jnp.bfloat16):
    """x: (B, 784). Returns (encoded (B, 3), decoded (B, 784)) in compute_dtype.

    Tile guidance: <=512 on v5e, 512-1024 on v7x, up to 2048 (bf16 only) on v6e.
    f32 tiles are capped at 1024 rows so double-buffered tiles + temporaries fit the
    48 MiB VMEM limit on every generation (v7x has 64 MiB physical VMEM per core).
    """
    B, F = x.shape
    assert F == N_FEATURES

    # Sublane-aligned batch tile, dtype-aware cap, and (when B > 8) at least two grid
    # steps so the "parallel" batch axis can be sharded across both v7x TensorCores.
    if B <= 8:
        tb = B if B < 8 else 8            # block == full batch (tiny) or one sublane group
    else:
        cap = 1024 if jnp.dtype(compute_dtype).itemsize >= 4 else 2048
        tb = _round_up(max(8, min(int(tile_b), cap)), 8)
        tb = min(tb, _round_up(pl.cdiv(B, 2), 8))
    grid = (pl.cdiv(B, tb),)              # ragged last block handled by masked stores

    prepped = _prepare_params(params, compute_dtype)

    # Full-array blocks for all parameters (tiny; constant index_map keeps them
    # resident in VMEM across the whole batch grid — never re-fetched).
    param_specs = [pl.BlockSpec(p.shape, lambda i: (0, 0)) for p in prepped]

    grid_spec = pltpu.PrefetchScalarGridSpec(
        num_scalar_prefetch=0,
        grid=grid,
        in_specs=[pl.BlockSpec((tb, F), lambda i: (i, 0))] + param_specs,
        out_specs=[
            pl.BlockSpec((tb, LATENT_PAD), lambda i: (i, 0)),
            pl.BlockSpec((tb, F), lambda i: (i, 0)),
        ],
    )

    out_shape = (
        jax.ShapeDtypeStruct((B, LATENT_PAD), compute_dtype),
        jax.ShapeDtypeStruct((B, F), compute_dtype),
    )

    enc, dec = pl.pallas_call(
        _autoencoder_kernel,
        out_shape=out_shape,
        grid_spec=grid_spec,
        compiler_params=pltpu.CompilerParams(
            dimension_semantics=("parallel",),
            vmem_limit_bytes=48 * 1024 * 1024,
        ),
    )(x, *prepped)

    # Only remaining post-pass: strip the 125 zero padding lanes of the tiny latent slab.
    return enc[:, :LATENT], dec


def _reference(x, params, compute_dtype=jnp.float32):
    """Pure-JAX reference of the PyTorch forward pass (with matching operand casts)."""
    cdt = compute_dtype

    def dense(h, w, b):
        return jnp.dot(h.astype(cdt), w.astype(cdt),
                       preferred_element_type=jnp.float32) + b

    ep, dp = params[:10], params[10:]
    h = x
    for i in range(4):
        h = jnp.tanh(dense(h, ep[2 * i], ep[2 * i + 1]))
    enc = dense(h, ep[8], ep[9])
    d = enc
    for i in range(4):
        d = jnp.tanh(dense(d, dp[2 * i], dp[2 * i + 1]))
    dec = jax.nn.sigmoid(dense(d, dp[8], dp[9]))
    return enc, dec


if __name__ == "__main__":
    key = jax.random.PRNGKey(0)
    kx1, kx2, kp = jax.random.split(key, 3)
    params = init_params(kp)

    # --- default bf16 path: ragged batch (not a tile multiple) -> 2 grid steps with a
    # masked last block; exercises the no-pad / no-precast / no-output-slice wrapper.
    B = 20
    x = jax.random.uniform(kx1, (B, N_FEATURES), dtype=jnp.float32)  # pixel-like inputs
    enc, dec = autoencoder_mnist(x, params)
    jax.block_until_ready((enc, dec))
    assert enc.shape == (B, LATENT) and dec.shape == (B, N_FEATURES)
    enc_ref16, dec_ref16 = _reference(x, params, compute_dtype=jnp.bfloat16)
    assert jnp.allclose(enc.astype(jnp.float32), enc_ref16, atol=2e-2, rtol=2e-2), "bf16 enc mismatch"
    assert jnp.allclose(dec.astype(jnp.float32), dec_ref16, atol=2e-2, rtol=2e-2), "bf16 dec mismatch"

    # --- f32 path (strict numerics), batch exactly one sublane-aligned tile.
    B2 = 8
    x2 = jax.random.uniform(kx2, (B2, N_FEATURES), dtype=jnp.float32)
    enc32, dec32 = autoencoder_mnist(x2, params, compute_dtype=jnp.float32)
    jax.block_until_ready((enc32, dec32))
    enc_ref, dec_ref = _reference(x2, params, compute_dtype=jnp.float32)
    assert enc32.shape == (B2, LATENT) and dec32.shape == (B2, N_FEATURES)
    assert jnp.allclose(enc32, enc_ref, atol=1e-4, rtol=1e-4), "f32 enc mismatch"
    assert jnp.allclose(dec32, dec_ref, atol=1e-4, rtol=1e-4), "f32 dec mismatch"

    print("KERNEL_OK")
</pallas_src>

<mosaic_0001>
module attributes {stable_mosaic.version = 11 : i64} {
  func.func @_autoencoder_kernel(%arg0: i32, %arg1: memref<16x784xf32, #tpu.memory_space<vmem>>, %arg2: memref<784x128xbf16, #tpu.memory_space<vmem>>, %arg3: memref<1x128xf32, #tpu.memory_space<vmem>>, %arg4: memref<128x64xbf16, #tpu.memory_space<vmem>>, %arg5: memref<1x64xf32, #tpu.memory_space<vmem>>, %arg6: memref<64x32xbf16, #tpu.memory_space<vmem>>, %arg7: memref<1x32xf32, #tpu.memory_space<vmem>>, %arg8: memref<32x16xbf16, #tpu.memory_space<vmem>>, %arg9: memref<1x16xf32, #tpu.memory_space<vmem>>, %arg10: memref<16x128xbf16, #tpu.memory_space<vmem>>, %arg11: memref<1x128xf32, #tpu.memory_space<vmem>>, %arg12: memref<128x16xbf16, #tpu.memory_space<vmem>>, %arg13: memref<1x16xf32, #tpu.memory_space<vmem>>, %arg14: memref<16x32xbf16, #tpu.memory_space<vmem>>, %arg15: memref<1x32xf32, #tpu.memory_space<vmem>>, %arg16: memref<32x64xbf16, #tpu.memory_space<vmem>>, %arg17: memref<1x64xf32, #tpu.memory_space<vmem>>, %arg18: memref<64x128xbf16, #tpu.memory_space<vmem>>, %arg19: memref<1x128xf32, #tpu.memory_space<vmem>>, %arg20: memref<128x784xbf16, #tpu.memory_space<vmem>>, %arg21: memref<1x784xf32, #tpu.memory_space<vmem>>, %arg22: memref<16x128xbf16, #tpu.memory_space<vmem>>, %arg23: memref<16x784xbf16, #tpu.memory_space<vmem>>) attributes {dimension_semantics = [#tpu.dimension_semantics<parallel>], iteration_bounds = array<i64: 2>, scalar_prefetch = 0 : i64, scratch_operands = 0 : i64, tpu.core_type = #tpu.core_type<tc>, window_params = [{transform_indices = @transform_0, window_bounds = array<i64: 16, 784>}, {pipeline_mode = #tpu.pipeline_mode<synchronous>, transform_indices = @transform_1, window_bounds = array<i64: 784, 128>}, {pipeline_mode = #tpu.pipeline_mode<synchronous>, transform_indices = @transform_2, window_bounds = array<i64: 1, 128>}, {pipeline_mode = #tpu.pipeline_mode<synchronous>, transform_indices = @transform_3, window_bounds = array<i64: 128, 64>}, {pipeline_mode = #tpu.pipeline_mode<synchronous>, transform_indices = @transform_4, window_bounds = array<i64: 1, 64>}, {pipeline_mode = #tpu.pipeline_mode<synchronous>, transform_indices = @transform_5, window_bounds = array<i64: 64, 32>}, {pipeline_mode = #tpu.pipeline_mode<synchronous>, transform_indices = @transform_6, window_bounds = array<i64: 1, 32>}, {pipeline_mode = #tpu.pipeline_mode<synchronous>, transform_indices = @transform_7, window_bounds = array<i64: 32, 16>}, {pipeline_mode = #tpu.pipeline_mode<synchronous>, transform_indices = @transform_8, window_bounds = array<i64: 1, 16>}, {pipeline_mode = #tpu.pipeline_mode<synchronous>, transform_indices = @transform_9, window_bounds = array<i64: 16, 128>}, {pipeline_mode = #tpu.pipeline_mode<synchronous>, transform_indices = @transform_10, window_bounds = array<i64: 1, 128>}, {pipeline_mode = #tpu.pipeline_mode<synchronous>, transform_indices = @transform_11, window_bounds = array<i64: 128, 16>}, {pipeline_mode = #tpu.pipeline_mode<synchronous>, transform_indices = @transform_12, window_bounds = array<i64: 1, 16>}, {pipeline_mode = #tpu.pipeline_mode<synchronous>, transform_indices = @transform_13, window_bounds = array<i64: 16, 32>}, {pipeline_mode = #tpu.pipeline_mode<synchronous>, transform_indices = @transform_14, window_bounds = array<i64: 1, 32>}, {pipeline_mode = #tpu.pipeline_mode<synchronous>, transform_indices = @transform_15, window_bounds = array<i64: 32, 64>}, {pipeline_mode = #tpu.pipeline_mode<synchronous>, transform_indices = @transform_16, window_bounds = array<i64: 1, 64>}, {pipeline_mode = #tpu.pipeline_mode<synchronous>, transform_indices = @transform_17, window_bounds = array<i64: 64, 128>}, {pipeline_mode = #tpu.pipeline_mode<synchronous>, transform_indices = @transform_18, window_bounds = array<i64: 1, 128>}, {pipeline_mode = #tpu.pipeline_mode<synchronous>, transform_indices = @transform_19, window_bounds = array<i64: 128, 784>}, {pipeline_mode = #tpu.pipeline_mode<synchronous>, transform_indices = @transform_20, window_bounds = array<i64: 1, 784>}, {transform_indices = @transform_21, window_bounds = array<i64: 16, 128>}, {transform_indices = @transform_22, window_bounds = array<i64: 16, 784>}]} {
    %c0 = arith.constant 0 : index
    %c0_0 = arith.constant 0 : index
    %0 = vector.load %arg1[%c0, %c0_0] : memref<16x784xf32, #tpu.memory_space<vmem>>, vector<16x784xf32>
    %1 = arith.truncf %0 : vector<16x784xf32> to vector<16x784xbf16>
    %c0_1 = arith.constant 0 : index
    %c0_2 = arith.constant 0 : index
    %2 = vector.load %arg2[%c0_1, %c0_2] : memref<784x128xbf16, #tpu.memory_space<vmem>>, vector<784x128xbf16>
    %cst = arith.constant dense<0.000000e+00> : vector<16x128xf32>
    %3 = tpu.matmul %1, %2, %cst {dimension_numbers = #tpu.dot_dimension_numbers<[1], [0], [0], [1], [0, 0, 1, 1], [], []>} : vector<16x784xbf16>, vector<784x128xbf16>, vector<16x128xf32> -> vector<16x128xf32>
    %c0_3 = arith.constant 0 : index
    %c0_4 = arith.constant 0 : index
    %4 = vector.load %arg3[%c0_3, %c0_4] : memref<1x128xf32, #tpu.memory_space<vmem>>, vector<1x128xf32>
    %5 = vector.broadcast %4 : vector<1x128xf32> to vector<16x128xf32>
    %6 = arith.addf %3, %5 : vector<16x128xf32>
    %7 = math.tanh %6 : vector<16x128xf32>
    %8 = arith.truncf %7 : vector<16x128xf32> to vector<16x128xbf16>
    %c0_5 = arith.constant 0 : index
    %c0_6 = arith.constant 0 : index
    %9 = vector.load %arg4[%c0_5, %c0_6] : memref<128x64xbf16, #tpu.memory_space<vmem>>, vector<128x64xbf16>
    %cst_7 = arith.constant dense<0.000000e+00> : vector<16x64xf32>
    %10 = tpu.matmul %8, %9, %cst_7 {dimension_numbers = #tpu.dot_dimension_numbers<[1], [0], [0], [1], [0, 0, 1, 1], [], []>} : vector<16x128xbf16>, vector<128x64xbf16>, vector<16x64xf32> -> vector<16x64xf32>
    %c0_8 = arith.constant 0 : index
    %c0_9 = arith.constant 0 : index
    %11 = vector.load %arg5[%c0_8, %c0_9] : memref<1x64xf32, #tpu.memory_space<vmem>>, vector<1x64xf32>
    %12 = vector.broadcast %11 : vector<1x64xf32> to vector<16x64xf32>
    %13 = arith.addf %10, %12 : vector<16x64xf32>
    %14 = math.tanh %13 : vector<16x64xf32>
    %15 = arith.truncf %14 : vector<16x64xf32> to vector<16x64xbf16>
    %c0_10 = arith.constant 0 : index
    %c0_11 = arith.constant 0 : index
    %16 = vector.load %arg6[%c0_10, %c0_11] : memref<64x32xbf16, #tpu.memory_space<vmem>>, vector<64x32xbf16>
    %cst_12 = arith.constant dense<0.000000e+00> : vector<16x32xf32>
    %17 = tpu.matmul %15, %16, %cst_12 {dimension_numbers = #tpu.dot_dimension_numbers<[1], [0], [0], [1], [0, 0, 1, 1], [], []>} : vector<16x64xbf16>, vector<64x32xbf16>, vector<16x32xf32> -> vector<16x32xf32>
    %c0_13 = arith.constant 0 : index
    %c0_14 = arith.constant 0 : index
    %18 = vector.load %arg7[%c0_13, %c0_14] : memref<1x32xf32, #tpu.memory_space<vmem>>, vector<1x32xf32>
    %19 = vector.broadcast %18 : vector<1x32xf32> to vector<16x32xf32>
    %20 = arith.addf %17, %19 : vector<16x32xf32>
    %21 = math.tanh %20 : vector<16x32xf32>
    %22 = arith.truncf %21 : vector<16x32xf32> to vector<16x32xbf16>
    %c0_15 = arith.constant 0 : index
    %c0_16 = arith.constant 0 : index
    %23 = vector.load %arg8[%c0_15, %c0_16] : memref<32x16xbf16, #tpu.memory_space<vmem>>, vector<32x16xbf16>
    %cst_17 = arith.constant dense<0.000000e+00> : vector<16x16xf32>
    %24 = tpu.matmul %22, %23, %cst_17 {dimension_numbers = #tpu.dot_dimension_numbers<[1], [0], [0], [1], [0, 0, 1, 1], [], []>} : vector<16x32xbf16>, vector<32x16xbf16>, vector<16x16xf32> -> vector<16x16xf32>
    %c0_18 = arith.constant 0 : index
    %c0_19 = arith.constant 0 : index
    %25 = vector.load %arg9[%c0_18, %c0_19] : memref<1x16xf32, #tpu.memory_space<vmem>>, vector<1x16xf32>
    %26 = vector.broadcast %25 : vector<1x16xf32> to vector<16x16xf32>
    %27 = arith.addf %24, %26 : vector<16x16xf32>
    %28 = math.tanh %27 : vector<16x16xf32>
    %29 = arith.truncf %28 : vector<16x16xf32> to vector<16x16xbf16>
    %c0_20 = arith.constant 0 : index
    %c0_21 = arith.constant 0 : index
    %30 = vector.load %arg10[%c0_20, %c0_21] : memref<16x128xbf16, #tpu.memory_space<vmem>>, vector<16x128xbf16>
    %cst_22 = arith.constant dense<0.000000e+00> : vector<16x128xf32>
    %31 = tpu.matmul %29, %30, %cst_22 {dimension_numbers = #tpu.dot_dimension_numbers<[1], [0], [0], [1], [0, 0, 1, 1], [], []>} : vector<16x16xbf16>, vector<16x128xbf16>, vector<16x128xf32> -> vector<16x128xf32>
    %c0_23 = arith.constant 0 : index
    %c0_24 = arith.constant 0 : index
    %32 = vector.load %arg11[%c0_23, %c0_24] : memref<1x128xf32, #tpu.memory_space<vmem>>, vector<1x128xf32>
    %33 = vector.broadcast %32 : vector<1x128xf32> to vector<16x128xf32>
    %34 = arith.addf %31, %33 : vector<16x128xf32>
    %35 = arith.truncf %34 : vector<16x128xf32> to vector<16x128xbf16>
    %c0_25 = arith.constant 0 : index
    %c0_26 = arith.constant 0 : index
    %36 = vector.load %arg22[%c0_25, %c0_26] : memref<16x128xbf16, #tpu.memory_space<vmem>>, vector<16x128xbf16>
    tpu.vector_store %arg22[%c0_25, %c0_26], %35 {strides = array<i32>} : memref<16x128xbf16, #tpu.memory_space<vmem>>, vector<16x128xbf16>,
    %37 = arith.truncf %34 : vector<16x128xf32> to vector<16x128xbf16>
    %c0_27 = arith.constant 0 : index
    %c0_28 = arith.constant 0 : index
    %38 = vector.load %arg12[%c0_27, %c0_28] : memref<128x16xbf16, #tpu.memory_space<vmem>>, vector<128x16xbf16>
    %cst_29 = arith.constant dense<0.000000e+00> : vector<16x16xf32>
    %39 = tpu.matmul %37, %38, %cst_29 {dimension_numbers = #tpu.dot_dimension_numbers<[1], [0], [0], [1], [0, 0, 1, 1], [], []>} : vector<16x128xbf16>, vector<128x16xbf16>, vector<16x16xf32> -> vector<16x16xf32>
    %c0_30 = arith.constant 0 : index
    %c0_31 = arith.constant 0 : index
    %40 = vector.load %arg13[%c0_30, %c0_31] : memref<1x16xf32, #tpu.memory_space<vmem>>, vector<1x16xf32>
    %41 = vector.broadcast %40 : vector<1x16xf32> to vector<16x16xf32>
    %42 = arith.addf %39, %41 : vector<16x16xf32>
    %43 = math.tanh %42 : vector<16x16xf32>
    %44 = arith.truncf %43 : vector<16x16xf32> to vector<16x16xbf16>
    %c0_32 = arith.constant 0 : index
    %c0_33 = arith.constant 0 : index
    %45 = vector.load %arg14[%c0_32, %c0_33] : memref<16x32xbf16, #tpu.memory_space<vmem>>, vector<16x32xbf16>
    %cst_34 = arith.constant dense<0.000000e+00> : vector<16x32xf32>
    %46 = tpu.matmul %44, %45, %cst_34 {dimension_numbers = #tpu.dot_dimension_numbers<[1], [0], [0], [1], [0, 0, 1, 1], [], []>} : vector<16x16xbf16>, vector<16x32xbf16>, vector<16x32xf32> -> vector<16x32xf32>
    %c0_35 = arith.constant 0 : index
    %c0_36 = arith.constant 0 : index
    %47 = vector.load %arg15[%c0_35, %c0_36] : memref<1x32xf32, #tpu.memory_space<vmem>>, vector<1x32xf32>
    %48 = vector.broadcast %47 : vector<1x32xf32> to vector<16x32xf32>
    %49 = arith.addf %46, %48 : vector<16x32xf32>
    %50 = math.tanh %49 : vector<16x32xf32>
    %51 = arith.truncf %50 : vector<16x32xf32> to vector<16x32xbf16>
    %c0_37 = arith.constant 0 : index
    %c0_38 = arith.constant 0 : index
    %52 = vector.load %arg16[%c0_37, %c0_38] : memref<32x64xbf16, #tpu.memory_space<vmem>>, vector<32x64xbf16>
    %cst_39 = arith.constant dense<0.000000e+00> : vector<16x64xf32>
    %53 = tpu.matmul %51, %52, %cst_39 {dimension_numbers = #tpu.dot_dimension_numbers<[1], [0], [0], [1], [0, 0, 1, 1], [], []>} : vector<16x32xbf16>, vector<32x64xbf16>, vector<16x64xf32> -> vector<16x64xf32>
    %c0_40 = arith.constant 0 : index
    %c0_41 = arith.constant 0 : index
    %54 = vector.load %arg17[%c0_40, %c0_41] : memref<1x64xf32, #tpu.memory_space<vmem>>, vector<1x64xf32>
    %55 = vector.broadcast %54 : vector<1x64xf32> to vector<16x64xf32>
    %56 = arith.addf %53, %55 : vector<16x64xf32>
    %57 = math.tanh %56 : vector<16x64xf32>
    %58 = arith.truncf %57 : vector<16x64xf32> to vector<16x64xbf16>
    %c0_42 = arith.constant 0 : index
    %c0_43 = arith.constant 0 : index
    %59 = vector.load %arg18[%c0_42, %c0_43] : memref<64x128xbf16, #tpu.memory_space<vmem>>, vector<64x128xbf16>
    %cst_44 = arith.constant dense<0.000000e+00> : vector<16x128xf32>
    %60 = tpu.matmul %58, %59, %cst_44 {dimension_numbers = #tpu.dot_dimension_numbers<[1], [0], [0], [1], [0, 0, 1, 1], [], []>} : vector<16x64xbf16>, vector<64x128xbf16>, vector<16x128xf32> -> vector<16x128xf32>
    %c0_45 = arith.constant 0 : index
    %c0_46 = arith.constant 0 : index
    %61 = vector.load %arg19[%c0_45, %c0_46] : memref<1x128xf32, #tpu.memory_space<vmem>>, vector<1x128xf32>
    %62 = vector.broadcast %61 : vector<1x128xf32> to vector<16x128xf32>
    %63 = arith.addf %60, %62 : vector<16x128xf32>
    %64 = math.tanh %63 : vector<16x128xf32>
    %65 = arith.truncf %64 : vector<16x128xf32> to vector<16x128xbf16>
    %c0_47 = arith.constant 0 : index
    %c0_48 = arith.constant 0 : index
    %66 = vector.load %arg20[%c0_47, %c0_48] : memref<128x784xbf16, #tpu.memory_space<vmem>>, vector<128x784xbf16>
    %cst_49 = arith.constant dense<0.000000e+00> : vector<16x784xf32>
    %67 = tpu.matmul %65, %66, %cst_49 {dimension_numbers = #tpu.dot_dimension_numbers<[1], [0], [0], [1], [0, 0, 1, 1], [], []>} : vector<16x128xbf16>, vector<128x784xbf16>, vector<16x784xf32> -> vector<16x784xf32>
    %c0_50 = arith.constant 0 : index
    %c0_51 = arith.constant 0 : index
    %68 = vector.load %arg21[%c0_50, %c0_51] : memref<1x784xf32, #tpu.memory_space<vmem>>, vector<1x784xf32>
    %69 = vector.broadcast %68 : vector<1x784xf32> to vector<16x784xf32>
    %70 = arith.addf %67, %69 : vector<16x784xf32>
    %cst_52 = arith.constant 5.000000e-01 : f32
    %71 = vector.broadcast %cst_52 : f32 to vector<16x784xf32>
    %72 = arith.mulf %71, %70 : vector<16x784xf32>
    %73 = math.tanh %72 : vector<16x784xf32>
    %cst_53 = arith.constant 5.000000e-01 : f32
    %74 = vector.broadcast %cst_53 : f32 to vector<16x784xf32>
    %75 = arith.mulf %74, %73 : vector<16x784xf32>
    %cst_54 = arith.constant 5.000000e-01 : f32
    %76 = vector.broadcast %cst_54 : f32 to vector<16x784xf32>
    %77 = arith.addf %75, %76 : vector<16x784xf32>
    %78 = arith.truncf %77 : vector<16x784xf32> to vector<16x784xbf16>
    %c0_55 = arith.constant 0 : index
    %c0_56 = arith.constant 0 : index
    %79 = vector.load %arg23[%c0_55, %c0_56] : memref<16x784xbf16, #tpu.memory_space<vmem>>, vector<16x784xbf16>
    tpu.vector_store %arg23[%c0_55, %c0_56], %78 {strides = array<i32>} : memref<16x784xbf16, #tpu.memory_space<vmem>>, vector<16x784xbf16>,
    return
  }
  func.func @transform_0(%arg0: i32) -> (i32, i32) {
    %c0_i32 = arith.constant 0 : i32
    %c0_i32_0 = arith.constant 0 : i32
    return %arg0, %c0_i32 : i32, i32
  }
  func.func @transform_1(%arg0: i32) -> (i32, i32) {
    %c0_i32 = arith.constant 0 : i32
    %c0_i32_0 = arith.constant 0 : i32
    %c0_i32_1 = arith.constant 0 : i32
    return %c0_i32, %c0_i32_0 : i32, i32
  }
  func.func @transform_2(%arg0: i32) -> (i32, i32) {
    %c0_i32 = arith.constant 0 : i32
    %c0_i32_0 = arith.constant 0 : i32
    %c0_i32_1 = arith.constant 0 : i32
    return %c0_i32, %c0_i32_0 : i32, i32
  }
  func.func @transform_3(%arg0: i32) -> (i32, i32) {
    %c0_i32 = arith.constant 0 : i32
    %c0_i32_0 = arith.constant 0 : i32
    %c0_i32_1 = arith.constant 0 : i32
    return %c0_i32, %c0_i32_0 : i32, i32
  }
  func.func @transform_4(%arg0: i32) -> (i32, i32) {
    %c0_i32 = arith.constant 0 : i32
    %c0_i32_0 = arith.constant 0 : i32
    %c0_i32_1 = arith.constant 0 : i32
    return %c0_i32, %c0_i32_0 : i32, i32
  }
  func.func @transform_5(%arg0: i32) -> (i32, i32) {
    %c0_i32 = arith.constant 0 : i32
    %c0_i32_0 = arith.constant 0 : i32
    %c0_i32_1 = arith.constant 0 : i32
    return %c0_i32, %c0_i32_0 : i32, i32
  }
  func.func @transform_6(%arg0: i32) -> (i32, i32) {
    %c0_i32 = arith.constant 0 : i32
    %c0_i32_0 = arith.constant 0 : i32
    %c0_i32_1 = arith.constant 0 : i32
    return %c0_i32, %c0_i32_0 : i32, i32
  }
  func.func @transform_7(%arg0: i32) -> (i32, i32) {
    %c0_i32 = arith.constant 0 : i32
    %c0_i32_0 = arith.constant 0 : i32
    %c0_i32_1 = arith.constant 0 : i32
    return %c0_i32, %c0_i32_0 : i32, i32
  }
  func.func @transform_8(%arg0: i32) -> (i32, i32) {
    %c0_i32 = arith.constant 0 : i32
    %c0_i32_0 = arith.constant 0 : i32
    %c0_i32_1 = arith.constant 0 : i32
    return %c0_i32, %c0_i32_0 : i32, i32
  }
  func.func @transform_9(%arg0: i32) -> (i32, i32) {
    %c0_i32 = arith.constant 0 : i32
    %c0_i32_0 = arith.constant 0 : i32
    %c0_i32_1 = arith.constant 0 : i32
    return %c0_i32, %c0_i32_0 : i32, i32
  }
  func.func @transform_10(%arg0: i32) -> (i32, i32) {
    %c0_i32 = arith.constant 0 : i32
    %c0_i32_0 = arith.constant 0 : i32
    %c0_i32_1 = arith.constant 0 : i32
    return %c0_i32, %c0_i32_0 : i32, i32
  }
  func.func @transform_11(%arg0: i32) -> (i32, i32) {
    %c0_i32 = arith.constant 0 : i32
    %c0_i32_0 = arith.constant 0 : i32
    %c0_i32_1 = arith.constant 0 : i32
    return %c0_i32, %c0_i32_0 : i32, i32
  }
  func.func @transform_12(%arg0: i32) -> (i32, i32) {
    %c0_i32 = arith.constant 0 : i32
    %c0_i32_0 = arith.constant 0 : i32
    %c0_i32_1 = arith.constant 0 : i32
    return %c0_i32, %c0_i32_0 : i32, i32
  }
  func.func @transform_13(%arg0: i32) -> (i32, i32) {
    %c0_i32 = arith.constant 0 : i32
    %c0_i32_0 = arith.constant 0 : i32
    %c0_i32_1 = arith.constant 0 : i32
    return %c0_i32, %c0_i32_0 : i32, i32
  }
  func.func @transform_14(%arg0: i32) -> (i32, i32) {
    %c0_i32 = arith.constant 0 : i32
    %c0_i32_0 = arith.constant 0 : i32
    %c0_i32_1 = arith.constant 0 : i32
    return %c0_i32, %c0_i32_0 : i32, i32
  }
  func.func @transform_15(%arg0: i32) -> (i32, i32) {
    %c0_i32 = arith.constant 0 : i32
    %c0_i32_0 = arith.constant 0 : i32
    %c0_i32_1 = arith.constant 0 : i32
    return %c0_i32, %c0_i32_0 : i32, i32
  }
  func.func @transform_16(%arg0: i32) -> (i32, i32) {
    %c0_i32 = arith.constant 0 : i32
    %c0_i32_0 = arith.constant 0 : i32
    %c0_i32_1 = arith.constant 0 : i32
    return %c0_i32, %c0_i32_0 : i32, i32
  }
  func.func @transform_17(%arg0: i32) -> (i32, i32) {
    %c0_i32 = arith.constant 0 : i32
    %c0_i32_0 = arith.constant 0 : i32
    %c0_i32_1 = arith.constant 0 : i32
    return %c0_i32, %c0_i32_0 : i32, i32
  }
  func.func @transform_18(%arg0: i32) -> (i32, i32) {
    %c0_i32 = arith.constant 0 : i32
    %c0_i32_0 = arith.constant 0 : i32
    %c0_i32_1 = arith.constant 0 : i32
    return %c0_i32, %c0_i32_0 : i32, i32
  }
  func.func @transform_19(%arg0: i32) -> (i32, i32) {
    %c0_i32 = arith.constant 0 : i32
    %c0_i32_0 = arith.constant 0 : i32
    %c0_i32_1 = arith.constant 0 : i32
    return %c0_i32, %c0_i32_0 : i32, i32
  }
  func.func @transform_20(%arg0: i32) -> (i32, i32) {
    %c0_i32 = arith.constant 0 : i32
    %c0_i32_0 = arith.constant 0 : i32
    %c0_i32_1 = arith.constant 0 : i32
    return %c0_i32, %c0_i32_0 : i32, i32
  }
  func.func @transform_21(%arg0: i32) -> (i32, i32) {
    %c0_i32 = arith.constant 0 : i32
    %c0_i32_0 = arith.constant 0 : i32
    return %arg0, %c0_i32 : i32, i32
  }
  func.func @transform_22(%arg0: i32) -> (i32, i32) {
    %c0_i32 = arith.constant 0 : i32
    %c0_i32_0 = arith.constant 0 : i32
    return %arg0, %c0_i32 : i32, i32
  }
}

</mosaic_0001>

<llo_original>
// kernel: autoencoder_mnist.1
$region0: #{autoencoder_mnist.1}
  #allocation0 [shape = 'u32[]', space=smem, size = 0x4, offset = 0x4, fixed_abs, tag = 'smem constant byte address 0x4 - core index']
  #allocation1 [shape = 'u32[72,128]{1,0:T(1,128)}', space=vmem, size = 0x9000, scoped, tag = 'internal scratch']
  %s0 = inlined_call_operand.vmem [shape: f32[20,784], index: 0, kind: input, shape index: {}]
  %s1 = inlined_call_operand.vmem [shape: bf16[784,128], index: 1, kind: input, shape index: {}]
  %s2 = inlined_call_operand.vmem [shape: f32[1,128], index: 2, kind: input, shape index: {}]
  %s3 = inlined_call_operand.vmem [shape: bf16[128,64], index: 3, kind: input, shape index: {}]
  %s4 = inlined_call_operand.vmem [shape: f32[1,64], index: 4, kind: input, shape index: {}]
  %s5 = inlined_call_operand.vmem [shape: bf16[64,32], index: 5, kind: input, shape index: {}]
  %s6 = inlined_call_operand.vmem [shape: f32[1,32], index: 6, kind: input, shape index: {}]
  %s7 = inlined_call_operand.vmem [shape: bf16[32,16], index: 7, kind: input, shape index: {}]
  %s8 = inlined_call_operand.vmem [shape: f32[1,16], index: 8, kind: input, shape index: {}]
  %s9 = inlined_call_operand.vmem [shape: bf16[16,128], index: 9, kind: input, shape index: {}]
  %s10 = inlined_call_operand.vmem [shape: f32[1,128], index: 10, kind: input, shape index: {}]
  %s11 = inlined_call_operand.vmem [shape: bf16[128,16], index: 11, kind: input, shape index: {}]
  %s12 = inlined_call_operand.vmem [shape: f32[1,16], index: 12, kind: input, shape index: {}]
  %s13 = inlined_call_operand.vmem [shape: bf16[16,32], index: 13, kind: input, shape index: {}]
  %s14 = inlined_call_operand.vmem [shape: f32[1,32], index: 14, kind: input, shape index: {}]
  %s15 = inlined_call_operand.vmem [shape: bf16[32,64], index: 15, kind: input, shape index: {}]
  %s16 = inlined_call_operand.vmem [shape: f32[1,64], index: 16, kind: input, shape index: {}]
  %s17 = inlined_call_operand.vmem [shape: bf16[64,128], index: 17, kind: input, shape index: {}]
  %s18 = inlined_call_operand.vmem [shape: f32[1,128], index: 18, kind: input, shape index: {}]
  %s19 = inlined_call_operand.vmem [shape: bf16[128,784], index: 19, kind: input, shape index: {}]
  %s20 = inlined_call_operand.vmem [shape: f32[1,784], index: 20, kind: input, shape index: {}]
  %s21 = inlined_call_operand.vmem [shape: bf16[20,128], index: 21, kind: output, shape index: {0}]
  %s22 = inlined_call_operand.hbm [shape: bf16[20,784], index: 22, kind: output, shape index: {1}]
  %23 = xla_tuple %s21, %s22
  %s24 = sld [smem:[#allocation0]]
  $region169: #{autoencoder_mnist.1} parent=0
    _
  %s26 = ssub.s32 1, %s24
  %s27 = scalar_select 0, %s26, %s24
  $region1: #{autoencoder_mnist.1} parent=0
    #allocation2 [shape = 'u8[8192]{0}', space=vmem, size = 0x2000, scoped, tag = 'output window, operand 0']
    #allocation3 [shape = 'u8[57344]{0}', space=vmem, size = 0xe000, scoped, tag = 'output window, operand 1']
    #allocation4 [shape = 's32[2]{0}', space=sflag, size = 0x8, scoped, tag = 'scoped memory for autoencoder_mnist.1']
    %28 = vsyncpa [#allocation4], 0
    %s29 = scalar_lea.sflag [#allocation4], 1
    %30 = vsyncpa %s29, 0
    loop: start=0, step=1, limit=4
    $region2: #{autoencoder_mnist.1} parent=1 // loop_pre_header
      _
    $region3: #{autoencoder_mnist.1} parent=1 // loop_header
      %s32 = sphi 0, %s36
      %p33 = scmp.ge.s32.totalorder %s32, 4
      %s42 = sphi 0, %s44
      %s45 = sphi 0, %s42
      %s46 = sphi 0, %s45
      %s62 = sphi 0, %s46
      %s66 = sphi 0, %s66
      %s68 = sphi 0, %s66
      %s69 = sphi 0, %s68
      %s83 = sphi 0, %s69
      %s87 = sphi 0, %s87
      %s89 = sphi 0, %s87
      %s90 = sphi 0, %s89
      %s104 = sphi 0, %s90
      %s108 = sphi 0, %s108
      %s110 = sphi 0, %s108
      %s111 = sphi 0, %s110
      %s125 = sphi 0, %s111
      %s129 = sphi 0, %s129
      %s131 = sphi 0, %s129
      %s132 = sphi 0, %s131
      %s146 = sphi 0, %s132
      %s150 = sphi 0, %s150
      %s152 = sphi 0, %s150
      %s153 = sphi 0, %s152
      %s167 = sphi 0, %s153
      %s171 = sphi 0, %s171
      %s173 = sphi 0, %s171
      %s174 = sphi 0, %s173
      %s188 = sphi 0, %s174
      %s192 = sphi 0, %s192
      %s194 = sphi 0, %s192
      %s195 = sphi 0, %s194
      %s209 = sphi 0, %s195
      %s213 = sphi 0, %s213
      %s215 = sphi 0, %s213
      %s216 = sphi 0, %s215
      %s230 = sphi 0, %s216
      %s234 = sphi 0, %s234
      %s236 = sphi 0, %s234
      %s237 = sphi 0, %s236
      %s251 = sphi 0, %s237
      %s255 = sphi 0, %s255
      %s257 = sphi 0, %s255
      %s258 = sphi 0, %s257
      %s272 = sphi 0, %s258
      %s276 = sphi 0, %s276
      %s278 = sphi 0, %s276
      %s279 = sphi 0, %s278
      %s293 = sphi 0, %s279
      %s297 = sphi 0, %s297
      %s299 = sphi 0, %s297
      %s300 = sphi 0, %s299
      %s314 = sphi 0, %s300
      %s318 = sphi 0, %s318
      %s320 = sphi 0, %s318
      %s321 = sphi 0, %s320
      %s335 = sphi 0, %s321
      %s339 = sphi 0, %s339
      %s341 = sphi 0, %s339
      %s342 = sphi 0, %s341
      %s356 = sphi 0, %s342
      %s360 = sphi 0, %s360
      %s362 = sphi 0, %s360
      %s363 = sphi 0, %s362
      %s377 = sphi 0, %s363
      %s381 = sphi 0, %s381
      %s383 = sphi 0, %s381
      %s384 = sphi 0, %s383
      %s398 = sphi 0, %s384
      %s402 = sphi 0, %s402
      %s404 = sphi 0, %s402
      %s405 = sphi 0, %s404
      %s419 = sphi 0, %s405
      %s423 = sphi 0, %s423
      %s425 = sphi 0, %s423
      %s426 = sphi 0, %s425
      %s440 = sphi 0, %s426
      %s444 = sphi 0, %s444
      %s446 = sphi 0, %s444
      %s447 = sphi 0, %s446
      %s461 = sphi 0, %s447
      %s465 = sphi 0, %s465
      %s467 = sphi 0, %s465
      %s468 = sphi 0, %s467
      %s482 = sphi 0, %s468
      %s488 = sphi 0, %s490
      %s491 = sphi 0, %s488
      %s492 = sphi 0, %s491
      %s508 = sphi 0, %s492
      %s514 = sphi 0, %s516
      %s517 = sphi 0, %s514
      %s518 = sphi 0, %s517
      %s534 = sphi 0, %s518
    $region4: #{autoencoder_mnist.1} parent=1 // loop_header_branch
      %35 = sbr.rel (%p33) target = $region8
    $region5: #{autoencoder_mnist.1} parent=1 // loop_body
      %s37 = ssub.s32 %s32, 1
      %s38 = ssub.s32 %s32, 2
      %s39 = sadd.s32 %s32, 1
      %s40 = ssub.s32 %s32, %s39
      %p41 = scmp.eq.s32.totalorder %s40, 0
      %s43 = sadd.s32 %s42, 1
      %s44 = scalar_select %p41, %s42, %s43
      %p47 = pneg %p41
      %p48 = scmp.eq.s32.totalorder %s32, 1
      %p49 = por %p47, %p48
      %p50 = scmp.ne.s32.totalorder %s42, %s45
      %p51 = scmp.eq.s32.totalorder %s32, 0
      %p52 = por %p50, %p51
      %p53 = scmp.ne.s32.totalorder %s42, %s45
      %p54 = scmp.eq.s32.totalorder %s37, 1
      %p55 = por %p53, %p54
      %p56 = scmp.ne.s32.totalorder %s45, %s46
      %p57 = scmp.eq.s32.totalorder %s37, 0
      %p58 = por %p56, %p57
      %p59 = scmp.ne.s32.totalorder %s45, %s46
      %p60 = scmp.eq.s32.totalorder %s38, 1
      %p61 = por %p59, %p60
      %p63 = scmp.ne.s32.totalorder %s46, %s62
      %p64 = scmp.eq.s32.totalorder %s38, 0
      %p65 = por %p63, %p64
      %s67 = sadd.s32 %s66, 1
      %p70 = scmp.eq.s32.totalorder %s32, 1
      %p71 = scmp.ne.s32.totalorder %s66, %s68
      %p72 = scmp.eq.s32.totalorder %s32, 0
      %p73 = por %p71, %p72
      %p74 = scmp.ne.s32.totalorder %s66, %s68
      %p75 = scmp.eq.s32.totalorder %s37, 1
      %p76 = por %p74, %p75
      %p77 = scmp.ne.s32.totalorder %s68, %s69
      %p78 = scmp.eq.s32.totalorder %s37, 0
      %p79 = por %p77, %p78
      %p80 = scmp.ne.s32.totalorder %s68, %s69
      %p81 = scmp.eq.s32.totalorder %s38, 1
      %p82 = por %p80, %p81
      %p84 = scmp.ne.s32.totalorder %s69, %s83
      %p85 = scmp.eq.s32.totalorder %s38, 0
      %p86 = por %p84, %p85
      %s88 = sadd.s32 %s87, 1
      %p91 = scmp.eq.s32.totalorder %s32, 1
      %p92 = scmp.ne.s32.totalorder %s87, %s89
      %p93 = scmp.eq.s32.totalorder %s32, 0
      %p94 = por %p92, %p93
      %p95 = scmp.ne.s32.totalorder %s87, %s89
      %p96 = scmp.eq.s32.totalorder %s37, 1
      %p97 = por %p95, %p96
      %p98 = scmp.ne.s32.totalorder %s89, %s90
      %p99 = scmp.eq.s32.totalorder %s37, 0
      %p100 = por %p98, %p99
      %p101 = scmp.ne.s32.totalorder %s89, %s90
      %p102 = scmp.eq.s32.totalorder %s38, 1
      %p103 = por %p101, %p102
      %p105 = scmp.ne.s32.totalorder %s90, %s104
      %p106 = scmp.eq.s32.totalorder %s38, 0
      %p107 = por %p105, %p106
      %s109 = sadd.s32 %s108, 1
      %p112 = scmp.eq.s32.totalorder %s32, 1
      %p113 = scmp.ne.s32.totalorder %s108, %s110
      %p114 = scmp.eq.s32.totalorder %s32, 0
      %p115 = por %p113, %p114
      %p116 = scmp.ne.s32.totalorder %s108, %s110
      %p117 = scmp.eq.s32.totalorder %s37, 1
      %p118 = por %p116, %p117
      %p119 = scmp.ne.s32.totalorder %s110, %s111
      %p120 = scmp.eq.s32.totalorder %s37, 0
      %p121 = por %p119, %p120
      %p122 = scmp.ne.s32.totalorder %s110, %s111
      %p123 = scmp.eq.s32.totalorder %s38, 1
      %p124 = por %p122, %p123
      %p126 = scmp.ne.s32.totalorder %s111, %s125
      %p127 = scmp.eq.s32.totalorder %s38, 0
      %p128 = por %p126, %p127
      %s130 = sadd.s32 %s129, 1
      %p133 = scmp.eq.s32.totalorder %s32, 1
      %p134 = scmp.ne.s32.totalorder %s129, %s131
      %p135 = scmp.eq.s32.totalorder %s32, 0
      %p136 = por %p134, %p135
      %p137 = scmp.ne.s32.totalorder %s129, %s131
      %p138 = scmp.eq.s32.totalorder %s37, 1
      %p139 = por %p137, %p138
      %p140 = scmp.ne.s32.totalorder %s131, %s132
      %p141 = scmp.eq.s32.totalorder %s37, 0
      %p142 = por %p140, %p141
      %p143 = scmp.ne.s32.totalorder %s131, %s132
      %p144 = scmp.eq.s32.totalorder %s38, 1
      %p145 = por %p143, %p144
      %p147 = scmp.ne.s32.totalorder %s132, %s146
      %p148 = scmp.eq.s32.totalorder %s38, 0
      %p149 = por %p147, %p148
      %s151 = sadd.s32 %s150, 1
      %p154 = scmp.eq.s32.totalorder %s32, 1
      %p155 = scmp.ne.s32.totalorder %s150, %s152
      %p156 = scmp.eq.s32.totalorder %s32, 0
      %p157 = por %p155, %p156
      %p158 = scmp.ne.s32.totalorder %s150, %s152
      %p159 = scmp.eq.s32.totalorder %s37, 1
      %p160 = por %p158, %p159
      %p161 = scmp.ne.s32.totalorder %s152, %s153
      %p162 = scmp.eq.s32.totalorder %s37, 0
      %p163 = por %p161, %p162
      %p164 = scmp.ne.s32.totalorder %s152, %s153
      %p165 = scmp.eq.s32.totalorder %s38, 1
      %p166 = por %p164, %p165
      %p168 = scmp.ne.s32.totalorder %s153, %s167
      %p169 = scmp.eq.s32.totalorder %s38, 0
      %p170 = por %p168, %p169
      %s172 = sadd.s32 %s171, 1
      %p175 = scmp.eq.s32.totalorder %s32, 1
      %p176 = scmp.ne.s32.totalorder %s171, %s173
      %p177 = scmp.eq.s32.totalorder %s32, 0
      %p178 = por %p176, %p177
      %p179 = scmp.ne.s32.totalorder %s171, %s173
      %p180 = scmp.eq.s32.totalorder %s37, 1
      %p181 = por %p179, %p180
      %p182 = scmp.ne.s32.totalorder %s173, %s174
      %p183 = scmp.eq.s32.totalorder %s37, 0
      %p184 = por %p182, %p183
      %p185 = scmp.ne.s32.totalorder %s173, %s174
      %p186 = scmp.eq.s32.totalorder %s38, 1
      %p187 = por %p185, %p186
      %p189 = scmp.ne.s32.totalorder %s174, %s188
      %p190 = scmp.eq.s32.totalorder %s38, 0
      %p191 = por %p189, %p190
      %s193 = sadd.s32 %s192, 1
      %p196 = scmp.eq.s32.totalorder %s32, 1
      %p197 = scmp.ne.s32.totalorder %s192, %s194
      %p198 = scmp.eq.s32.totalorder %s32, 0
      %p199 = por %p197, %p198
      %p200 = scmp.ne.s32.totalorder %s192, %s194
      %p201 = scmp.eq.s32.totalorder %s37, 1
      %p202 = por %p200, %p201
      %p203 = scmp.ne.s32.totalorder %s194, %s195
      %p204 = scmp.eq.s32.totalorder %s37, 0
      %p205 = por %p203, %p204
      %p206 = scmp.ne.s32.totalorder %s194, %s195
      %p207 = scmp.eq.s32.totalorder %s38, 1
      %p208 = por %p206, %p207
      %p210 = scmp.ne.s32.totalorder %s195, %s209
      %p211 = scmp.eq.s32.totalorder %s38, 0
      %p212 = por %p210, %p211
      %s214 = sadd.s32 %s213, 1
      %p217 = scmp.eq.s32.totalorder %s32, 1
      %p218 = scmp.ne.s32.totalorder %s213, %s215
      %p219 = scmp.eq.s32.totalorder %s32, 0
      %p220 = por %p218, %p219
      %p221 = scmp.ne.s32.totalorder %s213, %s215
      %p222 = scmp.eq.s32.totalorder %s37, 1
      %p223 = por %p221, %p222
      %p224 = scmp.ne.s32.totalorder %s215, %s216
      %p225 = scmp.eq.s32.totalorder %s37, 0
      %p226 = por %p224, %p225
      %p227 = scmp.ne.s32.totalorder %s215, %s216
      %p228 = scmp.eq.s32.totalorder %s38, 1
      %p229 = por %p227, %p228
      %p231 = scmp.ne.s32.totalorder %s216, %s230
      %p232 = scmp.eq.s32.totalorder %s38, 0
      %p233 = por %p231, %p232
      %s235 = sadd.s32 %s234, 1
      %p238 = scmp.eq.s32.totalorder %s32, 1
      %p239 = scmp.ne.s32.totalorder %s234, %s236
      %p240 = scmp.eq.s32.totalorder %s32, 0
      %p241 = por %p239, %p240
      %p242 = scmp.ne.s32.totalorder %s234, %s236
      %p243 = scmp.eq.s32.totalorder %s37, 1
      %p244 = por %p242, %p243
      %p245 = scmp.ne.s32.totalorder %s236, %s237
      %p246 = scmp.eq.s32.totalorder %s37, 0
      %p247 = por %p245, %p246
      %p248 = scmp.ne.s32.totalorder %s236, %s237
      %p249 = scmp.eq.s32.totalorder %s38, 1
      %p250 = por %p248, %p249
      %p252 = scmp.ne.s32.totalorder %s237, %s251
      %p253 = scmp.eq.s32.totalorder %s38, 0
      %p254 = por %p252, %p253
      %s256 = sadd.s32 %s255, 1
      %p259 = scmp.eq.s32.totalorder %s32, 1
      %p260 = scmp.ne.s32.totalorder %s255, %s257
      %p261 = scmp.eq.s32.totalorder %s32, 0
      %p262 = por %p260, %p261
      %p263 = scmp.ne.s32.totalorder %s255, %s257
      %p264 = scmp.eq.s32.totalorder %s37, 1
      %p265 = por %p263, %p264
      %p266 = scmp.ne.s32.totalorder %s257, %s258
      %p267 = scmp.eq.s32.totalorder %s37, 0
      %p268 = por %p266, %p267
      %p269 = scmp.ne.s32.totalorder %s257, %s258
      %p270 = scmp.eq.s32.totalorder %s38, 1
      %p271 = por %p269, %p270
      %p273 = scmp.ne.s32.totalorder %s258, %s272
      %p274 = scmp.eq.s32.totalorder %s38, 0
      %p275 = por %p273, %p274
      %s277 = sadd.s32 %s276, 1
      %p280 = scmp.eq.s32.totalorder %s32, 1
      %p281 = scmp.ne.s32.totalorder %s276, %s278
      %p282 = scmp.eq.s32.totalorder %s32, 0
      %p283 = por %p281, %p282
      %p284 = scmp.ne.s32.totalorder %s276, %s278
      %p285 = scmp.eq.s32.totalorder %s37, 1
      %p286 = por %p284, %p285
      %p287 = scmp.ne.s32.totalorder %s278, %s279
      %p288 = scmp.eq.s32.totalorder %s37, 0
      %p289 = por %p287, %p288
      %p290 = scmp.ne.s32.totalorder %s278, %s279
      %p291 = scmp.eq.s32.totalorder %s38, 1
      %p292 = por %p290, %p291
      %p294 = scmp.ne.s32.totalorder %s279, %s293
      %p295 = scmp.eq.s32.totalorder %s38, 0
      %p296 = por %p294, %p295
      %s298 = sadd.s32 %s297, 1
      %p301 = scmp.eq.s32.totalorder %s32, 1
      %p302 = scmp.ne.s32.totalorder %s297, %s299
      %p303 = scmp.eq.s32.totalorder %s32, 0
      %p304 = por %p302, %p303
      %p305 = scmp.ne.s32.totalorder %s297, %s299
      %p306 = scmp.eq.s32.totalorder %s37, 1
      %p307 = por %p305, %p306
      %p308 = scmp.ne.s32.totalorder %s299, %s300
      %p309 = scmp.eq.s32.totalorder %s37, 0
      %p310 = por %p308, %p309
      %p311 = scmp.ne.s32.totalorder %s299, %s300
      %p312 = scmp.eq.s32.totalorder %s38, 1
      %p313 = por %p311, %p312
      %p315 = scmp.ne.s32.totalorder %s300, %s314
      %p316 = scmp.eq.s32.totalorder %s38, 0
      %p317 = por %p315, %p316
      %s319 = sadd.s32 %s318, 1
      %p322 = scmp.eq.s32.totalorder %s32, 1
      %p323 = scmp.ne.s32.totalorder %s318, %s320
      %p324 = scmp.eq.s32.totalorder %s32, 0
      %p325 = por %p323, %p324
      %p326 = scmp.ne.s32.totalorder %s318, %s320
      %p327 = scmp.eq.s32.totalorder %s37, 1
      %p328 = por %p326, %p327
      %p329 = scmp.ne.s32.totalorder %s320, %s321
      %p330 = scmp.eq.s32.totalorder %s37, 0
      %p331 = por %p329, %p330
      %p332 = scmp.ne.s32.totalorder %s320, %s321
      %p333 = scmp.eq.s32.totalorder %s38, 1
      %p334 = por %p332, %p333
      %p336 = scmp.ne.s32.totalorder %s321, %s335
      %p337 = scmp.eq.s32.totalorder %s38, 0
      %p338 = por %p336, %p337
      %s340 = sadd.s32 %s339, 1
      %p343 = scmp.eq.s32.totalorder %s32, 1
      %p344 = scmp.ne.s32.totalorder %s339, %s341
      %p345 = scmp.eq.s32.totalorder %s32, 0
      %p346 = por %p344, %p345
      %p347 = scmp.ne.s32.totalorder %s339, %s341
      %p348 = scmp.eq.s32.totalorder %s37, 1
      %p349 = por %p347, %p348
      %p350 = scmp.ne.s32.totalorder %s341, %s342
      %p351 = scmp.eq.s32.totalorder %s37, 0
      %p352 = por %p350, %p351
      %p353 = scmp.ne.s32.totalorder %s341, %s342
      %p354 = scmp.eq.s32.totalorder %s38, 1
      %p355 = por %p353, %p354
      %p357 = scmp.ne.s32.totalorder %s342, %s356
      %p358 = scmp.eq.s32.totalorder %s38, 0
      %p359 = por %p357, %p358
      %s361 = sadd.s32 %s360, 1
      %p364 = scmp.eq.s32.totalorder %s32, 1
      %p365 = scmp.ne.s32.totalorder %s360, %s362
      %p366 = scmp.eq.s32.totalorder %s32, 0
      %p367 = por %p365, %p366
      %p368 = scmp.ne.s32.totalorder %s360, %s362
      %p369 = scmp.eq.s32.totalorder %s37, 1
      %p370 = por %p368, %p369
      %p371 = scmp.ne.s32.totalorder %s362, %s363
      %p372 = scmp.eq.s32.totalorder %s37, 0
      %p373 = por %p371, %p372
      %p374 = scmp.ne.s32.totalorder %s362, %s363
      %p375 = scmp.eq.s32.totalorder %s38, 1
      %p376 = por %p374, %p375
      %p378 = scmp.ne.s32.totalorder %s363, %s377
      %p379 = scmp.eq.s32.totalorder %s38, 0
      %p380 = por %p378, %p379
      %s382 = sadd.s32 %s381, 1
      %p385 = scmp.eq.s32.totalorder %s32, 1
      %p386 = scmp.ne.s32.totalorder %s381, %s383
      %p387 = scmp.eq.s32.totalorder %s32, 0
      %p388 = por %p386, %p387
      %p389 = scmp.ne.s32.totalorder %s381, %s383
      %p390 = scmp.eq.s32.totalorder %s37, 1
      %p391 = por %p389, %p390
      %p392 = scmp.ne.s32.totalorder %s383, %s384
      %p393 = scmp.eq.s32.totalorder %s37, 0
      %p394 = por %p392, %p393
      %p395 = scmp.ne.s32.totalorder %s383, %s384
      %p396 = scmp.eq.s32.totalorder %s38, 1
      %p397 = por %p395, %p396
      %p399 = scmp.ne.s32.totalorder %s384, %s398
      %p400 = scmp.eq.s32.totalorder %s38, 0
      %p401 = por %p399, %p400
      %s403 = sadd.s32 %s402, 1
      %p406 = scmp.eq.s32.totalorder %s32, 1
      %p407 = scmp.ne.s32.totalorder %s402, %s404
      %p408 = scmp.eq.s32.totalorder %s32, 0
      %p409 = por %p407, %p408
      %p410 = scmp.ne.s32.totalorder %s402, %s404
      %p411 = scmp.eq.s32.totalorder %s37, 1
      %p412 = por %p410, %p411
      %p413 = scmp.ne.s32.totalorder %s404, %s405
      %p414 = scmp.eq.s32.totalorder %s37, 0
      %p415 = por %p413, %p414
      %p416 = scmp.ne.s32.totalorder %s404, %s405
      %p417 = scmp.eq.s32.totalorder %s38, 1
      %p418 = por %p416, %p417
      %p420 = scmp.ne.s32.totalorder %s405, %s419
      %p421 = scmp.eq.s32.totalorder %s38, 0
      %p422 = por %p420, %p421
      %s424 = sadd.s32 %s423, 1
      %p427 = scmp.eq.s32.totalorder %s32, 1
      %p428 = scmp.ne.s32.totalorder %s423, %s425
      %p429 = scmp.eq.s32.totalorder %s32, 0
      %p430 = por %p428, %p429
      %p431 = scmp.ne.s32.totalorder %s423, %s425
      %p432 = scmp.eq.s32.totalorder %s37, 1
      %p433 = por %p431, %p432
      %p434 = scmp.ne.s32.totalorder %s425, %s426
      %p435 = scmp.eq.s32.totalorder %s37, 0
      %p436 = por %p434, %p435
      %p437 = scmp.ne.s32.totalorder %s425, %s426
      %p438 = scmp.eq.s32.totalorder %s38, 1
      %p439 = por %p437, %p438
      %p441 = scmp.ne.s32.totalorder %s426, %s440
      %p442 = scmp.eq.s32.totalorder %s38, 0
      %p443 = por %p441, %p442
      %s445 = sadd.s32 %s444, 1
      %p448 = scmp.eq.s32.totalorder %s32, 1
      %p449 = scmp.ne.s32.totalorder %s444, %s446
      %p450 = scmp.eq.s32.totalorder %s32, 0
      %p451 = por %p449, %p450
      %p452 = scmp.ne.s32.totalorder %s444, %s446
      %p453 = scmp.eq.s32.totalorder %s37, 1
      %p454 = por %p452, %p453
      %p455 = scmp.ne.s32.totalorder %s446, %s447
      %p456 = scmp.eq.s32.totalorder %s37, 0
      %p457 = por %p455, %p456
      %p458 = scmp.ne.s32.totalorder %s446, %s447
      %p459 = scmp.eq.s32.totalorder %s38, 1
      %p460 = por %p458, %p459
      %p462 = scmp.ne.s32.totalorder %s447, %s461
      %p463 = scmp.eq.s32.totalorder %s38, 0
      %p464 = por %p462, %p463
      %s466 = sadd.s32 %s465, 1
      %p469 = scmp.eq.s32.totalorder %s32, 1
      %p470 = scmp.ne.s32.totalorder %s465, %s467
      %p471 = scmp.eq.s32.totalorder %s32, 0
      %p472 = por %p470, %p471
      %p473 = scmp.ne.s32.totalorder %s465, %s467
      %p474 = scmp.eq.s32.totalorder %s37, 1
      %p475 = por %p473, %p474
      %p476 = scmp.ne.s32.totalorder %s467, %s468
      %p477 = scmp.eq.s32.totalorder %s37, 0
      %p478 = por %p476, %p477
      %p479 = scmp.ne.s32.totalorder %s467, %s468
      %p480 = scmp.eq.s32.totalorder %s38, 1
      %p481 = por %p479, %p480
      %p483 = scmp.ne.s32.totalorder %s468, %s482
      %p484 = scmp.eq.s32.totalorder %s38, 0
      %p485 = por %p483, %p484
      %s486 = ssub.s32 %s32, %s39
      %p487 = scmp.eq.s32.totalorder %s486, 0
      %s489 = sadd.s32 %s488, 1
      %s490 = scalar_select %p487, %s488, %s489
      %p493 = pneg %p487
      %p494 = scmp.eq.s32.totalorder %s32, 1
      %p495 = por %p493, %p494
      %p496 = scmp.ne.s32.totalorder %s488, %s491
      %p497 = scmp.eq.s32.totalorder %s32, 0
      %p498 = por %p496, %p497
      %p499 = scmp.ne.s32.totalorder %s488, %s491
      %p500 = scmp.eq.s32.totalorder %s37, 1
      %p501 = por %p499, %p500
      %p502 = scmp.ne.s32.totalorder %s491, %s492
      %p503 = scmp.eq.s32.totalorder %s37, 0
      %p504 = por %p502, %p503
      %p505 = scmp.ne.s32.totalorder %s491, %s492
      %p506 = scmp.eq.s32.totalorder %s38, 1
      %p507 = por %p505, %p506
      %p509 = scmp.ne.s32.totalorder %s492, %s508
      %p510 = scmp.eq.s32.totalorder %s38, 0
      %p511 = por %p509, %p510
      %s512 = ssub.s32 %s32, %s39
      %p513 = scmp.eq.s32.totalorder %s512, 0
      %s515 = sadd.s32 %s514, 1
      %s516 = scalar_select %p513, %s514, %s515
      %p519 = pneg %p513
      %p520 = scmp.eq.s32.totalorder %s32, 1
      %p521 = por %p519, %p520
      %p522 = scmp.ne.s32.totalorder %s514, %s517
      %p523 = scmp.eq.s32.totalorder %s32, 0
      %p524 = por %p522, %p523
      %p525 = scmp.ne.s32.totalorder %s514, %s517
      %p526 = scmp.eq.s32.totalorder %s37, 1
      %p527 = por %p525, %p526
      %p528 = scmp.ne.s32.totalorder %s517, %s518
      %p529 = scmp.eq.s32.totalorder %s37, 0
      %p530 = por %p528, %p529
      %p531 = scmp.ne.s32.totalorder %s517, %s518
      %p532 = scmp.eq.s32.totalorder %s38, 1
      %p533 = por %p531, %p532
      %p535 = scmp.ne.s32.totalorder %s518, %s534
      %p536 = scmp.eq.s32.totalorder %s38, 0
      %p537 = por %p535, %p536
      %p538 = scmp.le.s32.totalorder 1, %s32
      %p539 = scmp.lt.s32.totalorder %s32, 3
      %p540 = pnand %p538, %p539
      %p541 = pneg %p540
      // Predicated region
      $region9: #{autoencoder_mnist.1} parent=5 // pred_check
        _
      $region10: #{autoencoder_mnist.1} parent=5 // pred_check_branch
        %543 = sbr.rel (%p540) target = $region12
      $region11: #{autoencoder_mnist.1} parent=5 // pred_region
        %s544 = ssub.s32 %s32, 1
        // Predicated region
        $region13: #{autoencoder_mnist.1} parent=11 // pred_check
          %p545 = pneg %p79
        $region14: #{autoencoder_mnist.1} parent=11 // pred_check_branch
          %547 = sbr.rel (%p545) target = $region16
        $region15: #{autoencoder_mnist.1} parent=11 // pred_region
          _
        $region16: #{autoencoder_mnist.1} parent=11 // pred_fallthru
          _
        // Predicated region
        $region17: #{autoencoder_mnist.1} parent=11 // pred_check
          %p548 = pneg %p100
        $region18: #{autoencoder_mnist.1} parent=11 // pred_check_branch
          %550 = sbr.rel (%p548) target = $region20
        $region19: #{autoencoder_mnist.1} parent=11 // pred_region
          _
        $region20: #{autoencoder_mnist.1} parent=11 // pred_fallthru
          _
        // Predicated region
        $region21: #{autoencoder_mnist.1} parent=11 // pred_check
          %p551 = pneg %p121
        $region22: #{autoencoder_mnist.1} parent=11 // pred_check_branch
          %553 = sbr.rel (%p551) target = $region24
        $region23: #{autoencoder_mnist.1} parent=11 // pred_region
          _
        $region24: #{autoencoder_mnist.1} parent=11 // pred_fallthru
          _
        // Predicated region
        $region25: #{autoencoder_mnist.1} parent=11 // pred_check
          %p554 = pneg %p142
        $region26: #{autoencoder_mnist.1} parent=11 // pred_check_branch
          %556 = sbr.rel (%p554) target = $region28
        $region27: #{autoencoder_mnist.1} parent=11 // pred_region
          _
        $region28: #{autoencoder_mnist.1} parent=11 // pred_fallthru
          _
        // Predicated region
        $region29: #{autoencoder_mnist.1} parent=11 // pred_check
          %p557 = pneg %p163
        $region30: #{autoencoder_mnist.1} parent=11 // pred_check_branch
          %559 = sbr.rel (%p557) target = $region32
        $region31: #{autoencoder_mnist.1} parent=11 // pred_region
          _
        $region32: #{autoencoder_mnist.1} parent=11 // pred_fallthru
          _
        // Predicated region
        $region33: #{autoencoder_mnist.1} parent=11 // pred_check
          %p560 = pneg %p184
        $region34: #{autoencoder_mnist.1} parent=11 // pred_check_branch
          %562 = sbr.rel (%p560) target = $region36
        $region35: #{autoencoder_mnist.1} parent=11 // pred_region
          _
        $region36: #{autoencoder_mnist.1} parent=11 // pred_fallthru
          _
        // Predicated region
        $region37: #{autoencoder_mnist.1} parent=11 // pred_check
          %p563 = pneg %p205
        $region38: #{autoencoder_mnist.1} parent=11 // pred_check_branch
          %565 = sbr.rel (%p563) target = $region40
        $region39: #{autoencoder_mnist.1} parent=11 // pred_region
          _
        $region40: #{autoencoder_mnist.1} parent=11 // pred_fallthru
          _
        // Predicated region
        $region41: #{autoencoder_mnist.1} parent=11 // pred_check
          %p566 = pneg %p226
        $region42: #{autoencoder_mnist.1} parent=11 // pred_check_branch
          %568 = sbr.rel (%p566) target = $region44
        $region43: #{autoencoder_mnist.1} parent=11 // pred_region
          _
        $region44: #{autoencoder_mnist.1} parent=11 // pred_fallthru
          _
        // Predicated region
        $region45: #{autoencoder_mnist.1} parent=11 // pred_check
          %p569 = pneg %p247
        $region46: #{autoencoder_mnist.1} parent=11 // pred_check_branch
          %571 = sbr.rel (%p569) target = $region48
        $region47: #{autoencoder_mnist.1} parent=11 // pred_region
          _
        $region48: #{autoencoder_mnist.1} parent=11 // pred_fallthru
          _
        // Predicated region
        $region49: #{autoencoder_mnist.1} parent=11 // pred_check
          %p572 = pneg %p268
        $region50: #{autoencoder_mnist.1} parent=11 // pred_check_branch
          %574 = sbr.rel (%p572) target = $region52
        $region51: #{autoencoder_mnist.1} parent=11 // pred_region
          _
        $region52: #{autoencoder_mnist.1} parent=11 // pred_fallthru
          _
        // Predicated region
        $region53: #{autoencoder_mnist.1} parent=11 // pred_check
          %p575 = pneg %p289
        $region54: #{autoencoder_mnist.1} parent=11 // pred_check_branch
          %577 = sbr.rel (%p575) target = $region56
        $region55: #{autoencoder_mnist.1} parent=11 // pred_region
          _
        $region56: #{autoencoder_mnist.1} parent=11 // pred_fallthru
          _
        // Predicated region
        $region57: #{autoencoder_mnist.1} parent=11 // pred_check
          %p578 = pneg %p310
        $region58: #{autoencoder_mnist.1} parent=11 // pred_check_branch
          %580 = sbr.rel (%p578) target = $region60
        $region59: #{autoencoder_mnist.1} parent=11 // pred_region
          _
        $region60: #{autoencoder_mnist.1} parent=11 // pred_fallthru
          _
        // Predicated region
        $region61: #{autoencoder_mnist.1} parent=11 // pred_check
          %p581 = pneg %p331
        $region62: #{autoencoder_mnist.1} parent=11 // pred_check_branch
          %583 = sbr.rel (%p581) target = $region64
        $region63: #{autoencoder_mnist.1} parent=11 // pred_region
          _
        $region64: #{autoencoder_mnist.1} parent=11 // pred_fallthru
          _
        // Predicated region
        $region65: #{autoencoder_mnist.1} parent=11 // pred_check
          %p584 = pneg %p352
        $region66: #{autoencoder_mnist.1} parent=11 // pred_check_branch
          %586 = sbr.rel (%p584) target = $region68
        $region67: #{autoencoder_mnist.1} parent=11 // pred_region
          _
        $region68: #{autoencoder_mnist.1} parent=11 // pred_fallthru
          _
        // Predicated region
        $region69: #{autoencoder_mnist.1} parent=11 // pred_check
          %p587 = pneg %p373
        $region70: #{autoencoder_mnist.1} parent=11 // pred_check_branch
          %589 = sbr.rel (%p587) target = $region72
        $region71: #{autoencoder_mnist.1} parent=11 // pred_region
          _
        $region72: #{autoencoder_mnist.1} parent=11 // pred_fallthru
          _
        // Predicated region
        $region73: #{autoencoder_mnist.1} parent=11 // pred_check
          %p590 = pneg %p394
        $region74: #{autoencoder_mnist.1} parent=11 // pred_check_branch
          %592 = sbr.rel (%p590) target = $region76
        $region75: #{autoencoder_mnist.1} parent=11 // pred_region
          _
        $region76: #{autoencoder_mnist.1} parent=11 // pred_fallthru
          _
        // Predicated region
        $region77: #{autoencoder_mnist.1} parent=11 // pred_check
          %p593 = pneg %p415
        $region78: #{autoencoder_mnist.1} parent=11 // pred_check_branch
          %595 = sbr.rel (%p593) target = $region80
        $region79: #{autoencoder_mnist.1} parent=11 // pred_region
          _
        $region80: #{autoencoder_mnist.1} parent=11 // pred_fallthru
          _
        // Predicated region
        $region81: #{autoencoder_mnist.1} parent=11 // pred_check
          %p596 = pneg %p436
        $region82: #{autoencoder_mnist.1} parent=11 // pred_check_branch
          %598 = sbr.rel (%p596) target = $region84
        $region83: #{autoencoder_mnist.1} parent=11 // pred_region
          _
        $region84: #{autoencoder_mnist.1} parent=11 // pred_fallthru
          _
        // Predicated region
        $region85: #{autoencoder_mnist.1} parent=11 // pred_check
          %p599 = pneg %p457
        $region86: #{autoencoder_mnist.1} parent=11 // pred_check_branch
          %601 = sbr.rel (%p599) target = $region88
        $region87: #{autoencoder_mnist.1} parent=11 // pred_region
          _
        $region88: #{autoencoder_mnist.1} parent=11 // pred_fallthru
          _
        // Predicated region
        $region89: #{autoencoder_mnist.1} parent=11 // pred_check
          %p602 = pneg %p478
        $region90: #{autoencoder_mnist.1} parent=11 // pred_check_branch
          %604 = sbr.rel (%p602) target = $region92
        $region91: #{autoencoder_mnist.1} parent=11 // pred_region
          _
        $region92: #{autoencoder_mnist.1} parent=11 // pred_fallthru
          _
      $region12: #{autoencoder_mnist.1} parent=5 // pred_fallthru
        _
      %p605 = scmp.lt.s32.totalorder %s32, 2
      // Predicated region
      $region93: #{autoencoder_mnist.1} parent=5 // pred_check
        %p606 = pneg %p605
      $region94: #{autoencoder_mnist.1} parent=5 // pred_check_branch
        %608 = sbr.rel (%p606) target = $region96
      $region95: #{autoencoder_mnist.1} parent=5 // pred_region
        // Predicated region
        $region97: #{autoencoder_mnist.1} parent=95 // pred_check
          %p609 = pneg %p52
        $region98: #{autoencoder_mnist.1} parent=95 // pred_check_branch
          %611 = sbr.rel (%p609) target = $region100
        $region99: #{autoencoder_mnist.1} parent=95 // pred_region
          %s612 = smul.u32 2, %s32
          %s613 = ssub.s32 3, %s612
          %p614 = scmp.lt.s32.totalorder %s613, 2
          %s615 = scalar_select %p614, %s613, 2
          %s616 = smul.u32 8, %s615
          %s617 = smul.u32 %s616, 7
          %p618 = scmp.lt.s32.totalorder %s612, 2
          %s619 = scalar_select %p618, %s612, 2
          %s620 = smul.addr %s619, 7
          %s621 = smul.addr %s620, 8
          %s622 = scalar_lea.vmem %s0, %s621
          %s623 = smul.u32 2, %s32
          %s624 = ssub.s32 3, %s623
          %p625 = scmp.lt.s32.totalorder %s624, 2
          %s626 = scalar_select %p625, %s624, 2
          %s627 = smul.u32 8, %s626
          %s628 = smul.u32 %s627, 7
        $region100: #{autoencoder_mnist.1} parent=95 // pred_fallthru
          _
      $region96: #{autoencoder_mnist.1} parent=5 // pred_fallthru
        _
      %p629 = scmp.le.s32.totalorder 1, %s32
      %p630 = scmp.lt.s32.totalorder %s32, 3
      %p631 = pnand %p629, %p630
      %p632 = pneg %p631
      // Predicated region
      $region101: #{autoencoder_mnist.1} parent=5 // pred_check
        _
      $region102: #{autoencoder_mnist.1} parent=5 // pred_check_branch
        %634 = sbr.rel (%p631) target = $region104
      $region103: #{autoencoder_mnist.1} parent=5 // pred_region
        %s635 = ssub.s32 %s32, 1
        %s636 = smul.u32 2, %s37
        %s637 = ssub.s32 3, %s636
        %p638 = scmp.lt.s32.totalorder %s637, 2
        %s639 = scalar_select %p638, %s637, 2
        %s640 = smul.u32 8, %s639
        %s641 = smul.u32 %s640, 7
        %p642 = scmp.lt.s32.totalorder %s636, 2
        %s643 = scalar_select %p642, %s636, 2
        %s644 = smul.addr %s643, 7
        %s645 = smul.addr %s644, 8
        %s646 = scalar_lea.vmem %s0, %s645
        %p647 = pneg %p58
        %p648 = pneg %p55
        %p649 = pneg %p79
        %p650 = pneg %p76
        %p651 = pneg %p100
        %p652 = pneg %p97
        %p653 = pneg %p121
        %p654 = pneg %p118
        %p655 = pneg %p142
        %p656 = pneg %p139
        %p657 = pneg %p163
        %p658 = pneg %p160
        %p659 = pneg %p184
        %p660 = pneg %p181
        %p661 = pneg %p205
        %p662 = pneg %p202
        %p663 = pneg %p226
        %p664 = pneg %p223
        %p665 = pneg %p247
        %p666 = pneg %p244
        %p667 = pneg %p268
        %p668 = pneg %p265
        %p669 = pneg %p289
        %p670 = pneg %p286
        %p671 = pneg %p310
        %p672 = pneg %p307
        %p673 = pneg %p331
        %p674 = pneg %p328
        %p675 = pneg %p352
        %p676 = pneg %p349
        %p677 = pneg %p373
        %p678 = pneg %p370
        %p679 = pneg %p394
        %p680 = pneg %p391
        %p681 = pneg %p415
        %p682 = pneg %p412
        %p683 = pneg %p436
        %p684 = pneg %p433
        %p685 = pneg %p457
        %p686 = pneg %p454
        %p687 = pneg %p478
        %p688 = pneg %p475
        %p689 = pneg %p504
        %p690 = pneg %p501
        %s691 = sand.u32 %s491, 1
        %s692 = sand.u32 %s491, 1
        %s693 = smul.addr %s692, 8
        %s694 = scalar_lea.vmem [#allocation2], %s693
        %p695 = pneg %p530
        %p696 = pneg %p527
        %s697 = sand.u32 %s517, 1
        %s698 = scalar_lea.sflag [#allocation4], %s697
        %s699 = sand.u32 %s517, 1
        %s700 = smul.addr %s699, 56
        %s701 = scalar_lea.vmem [#allocation3], %s700
        %s702 = smul.u32 2, %s37
        %s703 = ssub.s32 3, %s702
        %p704 = scmp.lt.s32.totalorder %s703, 2
        %s705 = scalar_select %p704, %s703, 2
        %s706 = smul.u32 8, %s705
        %s707 = smul.u32 %s706, 7
        %p708 = scmp.lt.s32.totalorder %s702, 2
        %s709 = scalar_select %p708, %s702, 2
        %s710 = smul.addr %s709, 7
        %s711 = smul.addr %s710, 8
        %s712 = scalar_lea.vmem %s0, %s711
        %s713 = smul.u32 2, %s37
        %s714 = ssub.s32 3, %s713
        %p715 = scmp.lt.s32.totalorder %s714, 2
        %s716 = scalar_select %p715, %s714, 2
        %s717 = smul.u32 8, %s716
        %s718 = smul.u32 %s717, 7
        %s719 = smul.u32 2, %s37
        %s720 = ssub.s32 3, %s719
        %p721 = scmp.lt.s32.totalorder %s720, 2
        %s722 = scalar_select %p721, %s720, 2
        %s723 = smul.u32 4, %s722
        %s724 = smul.u32 2, %s37
        %s725 = ssub.s32 3, %s724
        %p726 = scmp.lt.s32.totalorder %s725, 2
        %s727 = scalar_select %p726, %s725, 2
        %s728 = smul.u32 4, %s727
        %s729 = smul.u32 %s728, 7
        %v731 = vld [vmem:[%s712] sm:$0xff]
        %v732 = vld [vmem:[%s712 + $0x8] sm:$0xff]
        %v733 = vld [vmem:[%s712 + $0x10] sm:$0xff]
        %v734 = vld [vmem:[%s712 + $0x18] sm:$0xff]
        %v735 = vld [vmem:[%s712 + $0x20] sm:$0xff]
        %v736 = vld [vmem:[%s712 + $0x28] sm:$0xff]
        %v737 = vld [vmem:[%s712 + $0x30] sm:$0xff]
        %v738 = vld [vmem:[%s712 + $0x38] sm:$0xff]
        %v739 = vld [vmem:[%s712 + $0x40] sm:$0xff]
        %v740 = vld [vmem:[%s712 + $0x48] sm:$0xff]
        %v741 = vld [vmem:[%s712 + $0x50] sm:$0xff]
        %v742 = vld [vmem:[%s712 + $0x58] sm:$0xff]
        %v743 = vld [vmem:[%s712 + $0x60] sm:$0xff]
        %v744 = vld [vmem:[%s712 + $0x68] sm:$0xff]
        %v745 = vpack.c.bf16 %v738, %v731
        %v746 = vpack.c.bf16 %v739, %v732
        %v747 = vpack.c.bf16 %v740, %v733
        %v748 = vpack.c.bf16 %v741, %v734
        %v749 = vpack.c.bf16 %v742, %v735
        %v750 = vpack.c.bf16 %v743, %v736
        %v751 = vpack.c.bf16 %v744, %v737
        %v752 = vld [vmem:[%s1] sm:$0xf]
        %v753 = vld [vmem:[%s1 + $0x4] sm:$0xf]
        %v754 = vld [vmem:[%s1 + $0x8] sm:$0xf]
        %v755 = vld [vmem:[%s1 + $0xc] sm:$0xf]
        %v756 = vld [vmem:[%s1 + $0x10] sm:$0xf]
        %v757 = vld [vmem:[%s1 + $0x14] sm:$0xf]
        %v758 = vld [vmem:[%s1 + $0x18] sm:$0xf]
        %v759 = vld [vmem:[%s1 + $0x1c] sm:$0xf]
        %v760 = vld [vmem:[%s1 + $0x20] sm:$0xf]
        %v761 = vld [vmem:[%s1 + $0x24] sm:$0xf]
        %v762 = vld [vmem:[%s1 + $0x28] sm:$0xf]
        %v763 = vld [vmem:[%s1 + $0x2c] sm:$0xf]
        %v764 = vld [vmem:[%s1 + $0x30] sm:$0xf]
        %v765 = vld [vmem:[%s1 + $0x34] sm:$0xf]
        %v766 = vld [vmem:[%s1 + $0x38] sm:$0xf]
        %v767 = vld [vmem:[%s1 + $0x3c] sm:$0xf]
        %v768 = vld [vmem:[%s1 + $0x40] sm:$0xf]
        %v769 = vld [vmem:[%s1 + $0x44] sm:$0xf]
        %v770 = vld [vmem:[%s1 + $0x48] sm:$0xf]
        %v771 = vld [vmem:[%s1 + $0x4c] sm:$0xf]
        %v772 = vld [vmem:[%s1 + $0x50] sm:$0xf]
        %v773 = vld [vmem:[%s1 + $0x54] sm:$0xf]
        %v774 = vld [vmem:[%s1 + $0x58] sm:$0xf]
        %v775 = vld [vmem:[%s1 + $0x5c] sm:$0xf]
        %v776 = vld [vmem:[%s1 + $0x60] sm:$0xf]
        %v777 = vld [vmem:[%s1 + $0x64] sm:$0xf]
        %v778 = vld [vmem:[%s1 + $0x68] sm:$0xf]
        %v779 = vld [vmem:[%s1 + $0x6c] sm:$0xf]
        %v780 = vld [vmem:[%s1 + $0x70] sm:$0xf]
        %v781 = vld [vmem:[%s1 + $0x74] sm:$0xf]
        %v782 = vld [vmem:[%s1 + $0x78] sm:$0xf]
        %v783 = vld [vmem:[%s1 + $0x7c] sm:$0xf]
        %v784 = vld [vmem:[%s1 + $0x80] sm:$0xf]
        %v785 = vld [vmem:[%s1 + $0x84] sm:$0xf]
        %v786 = vld [vmem:[%s1 + $0x88] sm:$0xf]
        %v787 = vld [vmem:[%s1 + $0x8c] sm:$0xf]
        %v788 = vld [vmem:[%s1 + $0x90] sm:$0xf]
        %v789 = vld [vmem:[%s1 + $0x94] sm:$0xf]
        %v790 = vld [vmem:[%s1 + $0x98] sm:$0xf]
        %v791 = vld [vmem:[%s1 + $0x9c] sm:$0xf]
        %v792 = vld [vmem:[%s1 + $0xa0] sm:$0xf]
        %v793 = vld [vmem:[%s1 + $0xa4] sm:$0xf]
        %v794 = vld [vmem:[%s1 + $0xa8] sm:$0xf]
        %v795 = vld [vmem:[%s1 + $0xac] sm:$0xf]
        %v796 = vld [vmem:[%s1 + $0xb0] sm:$0xf]
        %v797 = vld [vmem:[%s1 + $0xb4] sm:$0xf]
        %v798 = vld [vmem:[%s1 + $0xb8] sm:$0xf]
        %v799 = vld [vmem:[%s1 + $0xbc] sm:$0xf]
        %v800 = vld [vmem:[%s1 + $0xc0] sm:$0xf]
        %v801 = vld [vmem:[%s1 + $0xc4] sm:$0xf]
        %v802 = vld [vmem:[%s1 + $0xc8] sm:$0xf]
        %v803 = vld [vmem:[%s1 + $0xcc] sm:$0xf]
        %v804 = vld [vmem:[%s1 + $0xd0] sm:$0xf]
        %v805 = vld [vmem:[%s1 + $0xd4] sm:$0xf]
        %v806 = vld [vmem:[%s1 + $0xd8] sm:$0xf]
        %v807 = vld [vmem:[%s1 + $0xdc] sm:$0xf]
        %v808 = vld [vmem:[%s1 + $0xe0] sm:$0xf]
        %v809 = vld [vmem:[%s1 + $0xe4] sm:$0xf]
        %v810 = vld [vmem:[%s1 + $0xe8] sm:$0xf]
        %v811 = vld [vmem:[%s1 + $0xec] sm:$0xf]
        %v812 = vld [vmem:[%s1 + $0xf0] sm:$0xf]
        %v813 = vld [vmem:[%s1 + $0xf4] sm:$0xf]
        %v814 = vld [vmem:[%s1 + $0xf8] sm:$0xf]
        %v815 = vld [vmem:[%s1 + $0xfc] sm:$0xf]
        %v816 = vld [vmem:[%s1 + $0x100] sm:$0xf]
        %v817 = vld [vmem:[%s1 + $0x104] sm:$0xf]
        %v818 = vld [vmem:[%s1 + $0x108] sm:$0xf]
        %v819 = vld [vmem:[%s1 + $0x10c] sm:$0xf]
        %v820 = vld [vmem:[%s1 + $0x110] sm:$0xf]
        %v821 = vld [vmem:[%s1 + $0x114] sm:$0xf]
        %v822 = vld [vmem:[%s1 + $0x118] sm:$0xf]
        %v823 = vld [vmem:[%s1 + $0x11c] sm:$0xf]
        %v824 = vld [vmem:[%s1 + $0x120] sm:$0xf]
        %v825 = vld [vmem:[%s1 + $0x124] sm:$0xf]
        %v826 = vld [vmem:[%s1 + $0x128] sm:$0xf]
        %v827 = vld [vmem:[%s1 + $0x12c] sm:$0xf]
        %v828 = vld [vmem:[%s1 + $0x130] sm:$0xf]
        %v829 = vld [vmem:[%s1 + $0x134] sm:$0xf]
        %v830 = vld [vmem:[%s1 + $0x138] sm:$0xf]
        %v831 = vld [vmem:[%s1 + $0x13c] sm:$0xf]
        %v832 = vld [vmem:[%s1 + $0x140] sm:$0xf]
        %v833 = vld [vmem:[%s1 + $0x144] sm:$0xf]
        %v834 = vld [vmem:[%s1 + $0x148] sm:$0xf]
        %v835 = vld [vmem:[%s1 + $0x14c] sm:$0xf]
        %v836 = vld [vmem:[%s1 + $0x150] sm:$0xf]
        %v837 = vld [vmem:[%s1 + $0x154] sm:$0xf]
        %v838 = vld [vmem:[%s1 + $0x158] sm:$0xf]
        %v839 = vld [vmem:[%s1 + $0x15c] sm:$0xf]
        %v840 = vld [vmem:[%s1 + $0x160] sm:$0xf]
        %v841 = vld [vmem:[%s1 + $0x164] sm:$0xf]
        %v842 = vld [vmem:[%s1 + $0x168] sm:$0xf]
        %v843 = vld [vmem:[%s1 + $0x16c] sm:$0xf]
        %v844 = vld [vmem:[%s1 + $0x170] sm:$0xf]
        %v845 = vld [vmem:[%s1 + $0x174] sm:$0xf]
        %v846 = vld [vmem:[%s1 + $0x178] sm:$0xf]
        %v847 = vld [vmem:[%s1 + $0x17c] sm:$0xf]
        %v848 = vld [vmem:[%s1 + $0x180] sm:$0xf]
        %v849 = vld [vmem:[%s1 + $0x184] sm:$0xf]
        %v850 = vld [vmem:[%s2] sm:$0x1]
        %v852 = vperm.slane %v850, 0
        %v952 = vunpack.c.l.b16 %v752
        %v953 = vunpack.c.l.b16 %v753
        %v954 = vunpack.c.l.b16 %v754
        %v955 = vunpack.c.l.b16 %v755
        %v956 = vunpack.c.l.b16 %v756
        %v957 = vunpack.c.l.b16 %v757
        %v958 = vunpack.c.l.b16 %v758
        %v959 = vunpack.c.l.b16 %v759
        %v960 = vunpack.c.l.b16 %v760
        %v961 = vunpack.c.l.b16 %v761
        %v962 = vunpack.c.l.b16 %v762
        %v963 = vunpack.c.l.b16 %v763
        %v964 = vunpack.c.l.b16 %v764
        %v965 = vunpack.c.l.b16 %v765
        %v966 = vunpack.c.l.b16 %v766
        %v967 = vunpack.c.l.b16 %v767
        %v968 = vunpack.c.l.b16 %v768
        %v969 = vunpack.c.l.b16 %v769
        %v970 = vunpack.c.l.b16 %v770
        %v971 = vunpack.c.l.b16 %v771
        %v972 = vunpack.c.l.b16 %v772
        %v973 = vunpack.c.l.b16 %v773
        %v974 = vunpack.c.l.b16 %v774
        %v975 = vunpack.c.l.b16 %v775
        %v976 = vunpack.c.l.b16 %v776
        %v977 = vunpack.c.l.b16 %v777
        %v978 = vunpack.c.l.b16 %v778
        %v979 = vunpack.c.l.b16 %v779
        %v980 = vunpack.c.l.b16 %v780
        %v981 = vunpack.c.l.b16 %v781
        %v982 = vunpack.c.l.b16 %v782
        %v983 = vunpack.c.l.b16 %v783
        %v984 = vunpack.c.l.b16 %v784
        %v985 = vunpack.c.l.b16 %v785
        %v986 = vunpack.c.l.b16 %v786
        %v987 = vunpack.c.l.b16 %v787
        %v988 = vunpack.c.l.b16 %v788
        %v989 = vunpack.c.l.b16 %v789
        %v990 = vunpack.c.l.b16 %v790
        %v991 = vunpack.c.l.b16 %v791
        %v992 = vunpack.c.l.b16 %v792
        %v993 = vunpack.c.l.b16 %v793
        %v994 = vunpack.c.l.b16 %v794
        %v995 = vunpack.c.l.b16 %v795
        %v996 = vunpack.c.l.b16 %v796
        %v997 = vunpack.c.l.b16 %v797
        %v998 = vunpack.c.l.b16 %v798
        %v999 = vunpack.c.l.b16 %v799
        %v1000 = vunpack.c.l.b16 %v800
        %v1001 = vunpack.c.l.b16 %v801
        %v1002 = vunpack.c.l.b16 %v802
        %v1003 = vunpack.c.l.b16 %v803
        %v1004 = vunpack.c.l.b16 %v804
        %v1005 = vunpack.c.l.b16 %v805
        %v1006 = vunpack.c.l.b16 %v806
        %v1007 = vunpack.c.l.b16 %v807
        %v1008 = vunpack.c.l.b16 %v808
        %v1009 = vunpack.c.l.b16 %v809
        %v1010 = vunpack.c.l.b16 %v810
        %v1011 = vunpack.c.l.b16 %v811
        %v1012 = vunpack.c.l.b16 %v812
        %v1013 = vunpack.c.l.b16 %v813
        %v1014 = vunpack.c.l.b16 %v814
        %v1015 = vunpack.c.l.b16 %v815
        %v1016 = vunpack.c.l.b16 %v816
        %v1017 = vunpack.c.l.b16 %v817
        %v1018 = vunpack.c.l.b16 %v818
        %v1019 = vunpack.c.l.b16 %v819
        %v1020 = vunpack.c.l.b16 %v820
        %v1021 = vunpack.c.l.b16 %v821
        %v1022 = vunpack.c.l.b16 %v822
        %v1023 = vunpack.c.l.b16 %v823
        %v1024 = vunpack.c.l.b16 %v824
        %v1025 = vunpack.c.l.b16 %v825
        %v1026 = vunpack.c.l.b16 %v826
        %v1027 = vunpack.c.l.b16 %v827
        %v1028 = vunpack.c.l.b16 %v828
        %v1029 = vunpack.c.l.b16 %v829
        %v1030 = vunpack.c.l.b16 %v830
        %v1031 = vunpack.c.l.b16 %v831
        %v1032 = vunpack.c.l.b16 %v832
        %v1033 = vunpack.c.l.b16 %v833
        %v1034 = vunpack.c.l.b16 %v834
        %v1035 = vunpack.c.l.b16 %v835
        %v1036 = vunpack.c.l.b16 %v836
        %v1037 = vunpack.c.l.b16 %v837
        %v1038 = vunpack.c.l.b16 %v838
        %v1039 = vunpack.c.l.b16 %v839
        %v1040 = vunpack.c.l.b16 %v840
        %v1041 = vunpack.c.l.b16 %v841
        %v1042 = vunpack.c.l.b16 %v842
        %v1043 = vunpack.c.l.b16 %v843
        %v1044 = vunpack.c.l.b16 %v844
        %v1045 = vunpack.c.l.b16 %v845
        %v1046 = vunpack.c.l.b16 %v846
        %v1047 = vunpack.c.l.b16 %v847
        %v1048 = vunpack.c.l.b16 %v848
        %v1049 = vunpack.c.l.b16 %v849
        %v1050 = vpack.c.b16 %v953, %v952
        %v1051 = vpack.c.b16 %v955, %v954
        %v1052 = vpack.c.b16 %v957, %v956
        %v1053 = vpack.c.b16 %v959, %v958
        %v1054 = vpack.c.b16 %v961, %v960
        %v1055 = vpack.c.b16 %v963, %v962
        %v1056 = vpack.c.b16 %v965, %v964
        %v1057 = vpack.c.b16 %v967, %v966
        %v1058 = vpack.c.b16 %v969, %v968
        %v1059 = vpack.c.b16 %v971, %v970
        %v1060 = vpack.c.b16 %v973, %v972
        %v1061 = vpack.c.b16 %v975, %v974
        %v1062 = vpack.c.b16 %v977, %v976
        %v1063 = vpack.c.b16 %v979, %v978
        %v1064 = vpack.c.b16 %v981, %v980
        %v1065 = vpack.c.b16 %v983, %v982
        %v1066 = vpack.c.b16 %v985, %v984
        %v1067 = vpack.c.b16 %v987, %v986
        %v1068 = vpack.c.b16 %v989, %v988
        %v1069 = vpack.c.b16 %v991, %v990
        %v1070 = vpack.c.b16 %v993, %v992
        %v1071 = vpack.c.b16 %v995, %v994
        %v1072 = vpack.c.b16 %v997, %v996
        %v1073 = vpack.c.b16 %v999, %v998
        %v1074 = vpack.c.b16 %v1001, %v1000
        %v1075 = vpack.c.b16 %v1003, %v1002
        %v1076 = vpack.c.b16 %v1005, %v1004
        %v1077 = vpack.c.b16 %v1007, %v1006
        %v1078 = vpack.c.b16 %v1009, %v1008
        %v1079 = vpack.c.b16 %v1011, %v1010
        %v1080 = vpack.c.b16 %v1013, %v1012
        %v1081 = vpack.c.b16 %v1015, %v1014
        %v1082 = vpack.c.b16 %v1017, %v1016
        %v1083 = vpack.c.b16 %v1019, %v1018
        %v1084 = vpack.c.b16 %v1021, %v1020
        %v1085 = vpack.c.b16 %v1023, %v1022
        %v1086 = vpack.c.b16 %v1025, %v1024
        %v1087 = vpack.c.b16 %v1027, %v1026
        %v1088 = vpack.c.b16 %v1029, %v1028
        %v1089 = vpack.c.b16 %v1031, %v1030
        %v1090 = vpack.c.b16 %v1033, %v1032
        %v1091 = vpack.c.b16 %v1035, %v1034
        %v1092 = vpack.c.b16 %v1037, %v1036
        %v1093 = vpack.c.b16 %v1039, %v1038
        %v1094 = vpack.c.b16 %v1041, %v1040
        %v1095 = vpack.c.b16 %v1043, %v1042
        %v1096 = vpack.c.b16 %v1045, %v1044
        %v1097 = vpack.c.b16 %v1047, %v1046
        %v1098 = vpack.c.b16 %v1049, %v1048
        %vm1148 = vcmask 130048
        %v1150 = vsel %vm1148, %v751, 0
        %1152 = vmatpush.bf16.msra.mxu0 %v1057
        %1153 = vmatpush.bf16.msra.mxu0 %v1056
        %1154 = vmatpush.bf16.msra.mxu0 %v1055
        %1155 = vmatpush.bf16.msra.mxu0 %v1054
        %1156 = vmatpush.bf16.msra.mxu0 %v1053
        %1157 = vmatpush.bf16.msra.mxu0 %v1052
        %1158 = vmatpush.bf16.msra.mxu0 %v1051
        %1159 = vmatpush.bf16.msra.mxu0 %v1050
        %1160 = vmatmul.bf16.gmra.mxu0 %v745
        %v1161 = vpop.f32.mrf.mxu0
        %v1162 = vadd.f32 %v852, %v1161
        %v1163 = vpop.f32.mrf.mxu0
        %v1164 = vadd.f32 %v852, %v1163
        %1165 = vdwg.mxu0
        %1166 = vmatpush.bf16.msra.mxu0 %v1065
        %1167 = vmatpush.bf16.msra.mxu0 %v1064
        %1168 = vmatpush.bf16.msra.mxu0 %v1063
        %1169 = vmatpush.bf16.msra.mxu0 %v1062
        %1170 = vmatpush.bf16.msra.mxu0 %v1061
        %1171 = vmatpush.bf16.msra.mxu0 %v1060
        %1172 = vmatpush.bf16.msra.mxu0 %v1059
        %1173 = vmatpush.bf16.msra.mxu0 %v1058
        %1174 = vmatmul.bf16.gmra.mxu0 %v746
        %v1175 = vpop.f32.mrf.mxu0
        %v1176 = vadd.f32 %v1162, %v1175
        %v1177 = vpop.f32.mrf.mxu0
        %v1178 = vadd.f32 %v1164, %v1177
        %1179 = vdwg.mxu0
        %1180 = vmatpush.bf16.msra.mxu0 %v1073
        %1181 = vmatpush.bf16.msra.mxu0 %v1072
        %1182 = vmatpush.bf16.msra.mxu0 %v1071
        %1183 = vmatpush.bf16.msra.mxu0 %v1070
        %1184 = vmatpush.bf16.msra.mxu0 %v1069
        %1185 = vmatpush.bf16.msra.mxu0 %v1068
        %1186 = vmatpush.bf16.msra.mxu0 %v1067
        %1187 = vmatpush.bf16.msra.mxu0 %v1066
        %1188 = vmatmul.bf16.gmra.mxu0 %v747
        %v1189 = vpop.f32.mrf.mxu0
        %v1190 = vadd.f32 %v1176, %v1189
        %v1191 = vpop.f32.mrf.mxu0
        %v1192 = vadd.f32 %v1178, %v1191
        %1193 = vdwg.mxu0
        %1194 = vmatpush.bf16.msra.mxu0 %v1081
        %1195 = vmatpush.bf16.msra.mxu0 %v1080
        %1196 = vmatpush.bf16.msra.mxu0 %v1079
        %1197 = vmatpush.bf16.msra.mxu0 %v1078
        %1198 = vmatpush.bf16.msra.mxu0 %v1077
        %1199 = vmatpush.bf16.msra.mxu0 %v1076
        %1200 = vmatpush.bf16.msra.mxu0 %v1075
        %1201 = vmatpush.bf16.msra.mxu0 %v1074
        %1202 = vmatmul.bf16.gmra.mxu0 %v748
        %v1203 = vpop.f32.mrf.mxu0
        %v1204 = vadd.f32 %v1190, %v1203
        %v1205 = vpop.f32.mrf.mxu0
        %v1206 = vadd.f32 %v1192, %v1205
        %1207 = vdwg.mxu0
        %1208 = vmatpush.bf16.msra.mxu0 %v1089
        %1209 = vmatpush.bf16.msra.mxu0 %v1088
        %1210 = vmatpush.bf16.msra.mxu0 %v1087
        %1211 = vmatpush.bf16.msra.mxu0 %v1086
        %1212 = vmatpush.bf16.msra.mxu0 %v1085
        %1213 = vmatpush.bf16.msra.mxu0 %v1084
        %1214 = vmatpush.bf16.msra.mxu0 %v1083
        %1215 = vmatpush.bf16.msra.mxu0 %v1082
        %1216 = vmatmul.bf16.gmra.mxu0 %v749
        %v1217 = vpop.f32.mrf.mxu0
        %v1218 = vadd.f32 %v1204, %v1217
        %v1219 = vpop.f32.mrf.mxu0
        %v1220 = vadd.f32 %v1206, %v1219
        %1221 = vdwg.mxu0
        %1222 = vmatpush.bf16.msra.mxu0 %v1097
        %1223 = vmatpush.bf16.msra.mxu0 %v1096
        %1224 = vmatpush.bf16.msra.mxu0 %v1095
        %1225 = vmatpush.bf16.msra.mxu0 %v1094
        %1226 = vmatpush.bf16.msra.mxu0 %v1093
        %1227 = vmatpush.bf16.msra.mxu0 %v1092
        %1228 = vmatpush.bf16.msra.mxu0 %v1091
        %1229 = vmatpush.bf16.msra.mxu0 %v1090
        %1230 = vmatmul.bf16.gmra.mxu0 %v750
        %v1231 = vpop.f32.mrf.mxu0
        %v1232 = vadd.f32 %v1218, %v1231
        %v1233 = vpop.f32.mrf.mxu0
        %v1234 = vadd.f32 %v1220, %v1233
        %1235 = vdwg.mxu0
        %1236 = vmatpush.bf16.msra.mxu0 0
        %1237 = vmatpush.bf16.msra.mxu0 0
        %1238 = vmatpush.bf16.msra.mxu0 0
        %1239 = vmatpush.bf16.msra.mxu0 0
        %1240 = vmatpush.bf16.msra.mxu0 0
        %1241 = vmatpush.bf16.msra.mxu0 0
        %1242 = vmatpush.bf16.msra.mxu0 0
        %1243 = vmatpush.bf16.msra.mxu0 %v1098
        %1244 = vmatmul.bf16.gmra.mxu0 %v1150
        %v1245 = vpop.f32.mrf.mxu0
        %v1246 = vadd.f32 %v1232, %v1245
        %v1247 = vpop.f32.mrf.mxu0
        %v1248 = vadd.f32 %v1234, %v1247
        %1249 = vdwg.mxu0
        %v1250 = vtanh.pop %v1246
        %v1251 = vtanh.pop %v1248
        %v1252 = vpack.c.bf16 %v1251, %v1250
        %v1253 = vld [vmem:[%s3] sm:$0xf]
        %v1254 = vld [vmem:[%s3 + $0x4] sm:$0xf]
        %v1255 = vld [vmem:[%s3 + $0x8] sm:$0xf]
        %v1256 = vld [vmem:[%s3 + $0xc] sm:$0xf]
        %v1257 = vld [vmem:[%s3 + $0x10] sm:$0xf]
        %v1258 = vld [vmem:[%s3 + $0x14] sm:$0xf]
        %v1259 = vld [vmem:[%s3 + $0x18] sm:$0xf]
        %v1260 = vld [vmem:[%s3 + $0x1c] sm:$0xf]
        %v1261 = vld [vmem:[%s3 + $0x20] sm:$0xf]
        %v1262 = vld [vmem:[%s3 + $0x24] sm:$0xf]
        %v1263 = vld [vmem:[%s3 + $0x28] sm:$0xf]
        %v1264 = vld [vmem:[%s3 + $0x2c] sm:$0xf]
        %v1265 = vld [vmem:[%s3 + $0x30] sm:$0xf]
        %v1266 = vld [vmem:[%s3 + $0x34] sm:$0xf]
        %v1267 = vld [vmem:[%s3 + $0x38] sm:$0xf]
        %v1268 = vld [vmem:[%s3 + $0x3c] sm:$0xf]
        %v1269 = vld [vmem:[%s4] sm:$0x1]
        %v1271 = vperm.slane %v1269, 0
        %v1289 = vunpack.c.l.b16 %v1253
        %v1290 = vunpack.c.l.b16 %v1254
        %v1291 = vunpack.c.l.b16 %v1255
        %v1292 = vunpack.c.l.b16 %v1256
        %v1293 = vunpack.c.l.b16 %v1257
        %v1294 = vunpack.c.l.b16 %v1258
        %v1295 = vunpack.c.l.b16 %v1259
        %v1296 = vunpack.c.l.b16 %v1260
        %v1297 = vunpack.c.l.b16 %v1261
        %v1298 = vunpack.c.l.b16 %v1262
        %v1299 = vunpack.c.l.b16 %v1263
        %v1300 = vunpack.c.l.b16 %v1264
        %v1301 = vunpack.c.l.b16 %v1265
        %v1302 = vunpack.c.l.b16 %v1266
        %v1303 = vunpack.c.l.b16 %v1267
        %v1304 = vunpack.c.l.b16 %v1268
        %v1305 = vpack.c.b16 %v1290, %v1289
        %v1306 = vpack.c.b16 %v1292, %v1291
        %v1307 = vpack.c.b16 %v1294, %v1293
        %v1308 = vpack.c.b16 %v1296, %v1295
        %v1309 = vpack.c.b16 %v1298, %v1297
        %v1310 = vpack.c.b16 %v1300, %v1299
        %v1311 = vpack.c.b16 %v1302, %v1301
        %v1312 = vpack.c.b16 %v1304, %v1303
        %1321 = vmatpush.bf16.msra.mxu0 %v1312
        %1322 = vmatpush.bf16.msra.mxu0 %v1311
        %1323 = vmatpush.bf16.msra.mxu0 %v1310
        %1324 = vmatpush.bf16.msra.mxu0 %v1309
        %1325 = vmatpush.bf16.msra.mxu0 %v1308
        %1326 = vmatpush.bf16.msra.mxu0 %v1307
        %1327 = vmatpush.bf16.msra.mxu0 %v1306
        %1328 = vmatpush.bf16.msra.mxu0 %v1305
        %1329 = vmatmul.bf16.gmra.mxu0 %v1252
        %v1330 = vpop.f32.mrf.mxu0
        %v1331 = vadd.f32 %v1271, %v1330
        %v1332 = vpop.f32.mrf.mxu0
        %v1333 = vadd.f32 %v1271, %v1332
        %1334 = vdwg.mxu0
        %v1335 = vtanh.pop %v1331
        %v1336 = vtanh.pop %v1333
        %v1337 = vpack.c.bf16 %v1336, %v1335
        %v1338 = vld [vmem:[%s5] sm:$0xf]
        %v1339 = vld [vmem:[%s5 + $0x4] sm:$0xf]
        %v1340 = vld [vmem:[%s5 + $0x8] sm:$0xf]
        %v1341 = vld [vmem:[%s5 + $0xc] sm:$0xf]
        %v1342 = vld [vmem:[%s5 + $0x10] sm:$0xf]
        %v1343 = vld [vmem:[%s5 + $0x14] sm:$0xf]
        %v1344 = vld [vmem:[%s5 + $0x18] sm:$0xf]
        %v1345 = vld [vmem:[%s5 + $0x1c] sm:$0xf]
        %v1346 = vld [vmem:[%s6] sm:$0x1]
        %v1348 = vperm.slane %v1346, 0
        %v1358 = vunpack.c.l.b16 %v1338
        %v1359 = vunpack.c.l.b16 %v1339
        %v1360 = vunpack.c.l.b16 %v1340
        %v1361 = vunpack.c.l.b16 %v1341
        %v1362 = vunpack.c.l.b16 %v1342
        %v1363 = vunpack.c.l.b16 %v1343
        %v1364 = vunpack.c.l.b16 %v1344
        %v1365 = vunpack.c.l.b16 %v1345
        %v1366 = vpack.c.b16 %v1359, %v1358
        %v1367 = vpack.c.b16 %v1361, %v1360
        %v1368 = vpack.c.b16 %v1363, %v1362
        %v1369 = vpack.c.b16 %v1365, %v1364
        %vm1374 = vcmask 523264
        %v1376 = vsel %vm1374, %v1337, 0
        %1378 = vmatpush.bf16.msra.mxu0 0
        %1379 = vmatpush.bf16.msra.mxu0 0
        %1380 = vmatpush.bf16.msra.mxu0 0
        %1381 = vmatpush.bf16.msra.mxu0 0
        %1382 = vmatpush.bf16.msra.mxu0 %v1369
        %1383 = vmatpush.bf16.msra.mxu0 %v1368
        %1384 = vmatpush.bf16.msra.mxu0 %v1367
        %1385 = vmatpush.bf16.msra.mxu0 %v1366
        %1386 = vmatmul.bf16.gmra.mxu0 %v1376
        %v1387 = vpop.f32.mrf.mxu0
        %v1388 = vadd.f32 %v1348, %v1387
        %v1389 = vpop.f32.mrf.mxu0
        %v1390 = vadd.f32 %v1348, %v1389
        %1391 = vdwg.mxu0
        %v1392 = vtanh.pop %v1388
        %v1393 = vtanh.pop %v1390
        %v1394 = vpack.c.bf16 %v1393, %v1392
        %v1395 = vld [vmem:[%s7] sm:$0xf]
        %v1396 = vld [vmem:[%s7 + $0x4] sm:$0xf]
        %v1397 = vld [vmem:[%s7 + $0x8] sm:$0xf]
        %v1398 = vld [vmem:[%s7 + $0xc] sm:$0xf]
        %v1399 = vld [vmem:[%s8] sm:$0x1]
        %v1401 = vperm.slane %v1399, 0
        %v1407 = vunpack.c.l.b16 %v1395
        %v1408 = vunpack.c.l.b16 %v1396
        %v1409 = vunpack.c.l.b16 %v1397
        %v1410 = vunpack.c.l.b16 %v1398
        %v1411 = vpack.c.b16 %v1408, %v1407
        %v1412 = vpack.c.b16 %v1410, %v1409
        %vm1415 = vcmask 261120
        %v1417 = vsel %vm1415, %v1394, 0
        %1419 = vmatpush.bf16.msra.mxu0 0
        %1420 = vmatpush.bf16.msra.mxu0 0
        %1421 = vmatpush.bf16.msra.mxu0 0
        %1422 = vmatpush.bf16.msra.mxu0 0
        %1423 = vmatpush.bf16.msra.mxu0 0
        %1424 = vmatpush.bf16.msra.mxu0 0
        %1425 = vmatpush.bf16.msra.mxu0 %v1412
        %1426 = vmatpush.bf16.msra.mxu0 %v1411
        %1427 = vmatmul.bf16.gmra.mxu0 %v1417
        %v1428 = vpop.f32.mrf.mxu0
        %v1429 = vadd.f32 %v1401, %v1428
        %v1430 = vpop.f32.mrf.mxu0
        %v1431 = vadd.f32 %v1401, %v1430
        %1432 = vdwg.mxu0
        %v1433 = vtanh.pop %v1429
        %v1434 = vtanh.pop %v1431
        %v1435 = vpack.c.bf16 %v1434, %v1433
        %v1436 = vld [vmem:[%s9] sm:$0xf]
        %v1437 = vld [vmem:[%s9 + $0x4] sm:$0xf]
        %v1438 = vld [vmem:[%s10] sm:$0x1]
        %v1440 = vperm.slane %v1438, 0
        %v1444 = vunpack.c.l.b16 %v1436
        %v1445 = vunpack.c.l.b16 %v1437
        %v1446 = vpack.c.b16 %v1445, %v1444
        %v1449 = vsel %vm1148, %v1435, 0
        %1451 = vmatpush.bf16.msra.mxu0 0
        %1452 = vmatpush.bf16.msra.mxu0 0
        %1453 = vmatpush.bf16.msra.mxu0 0
        %1454 = vmatpush.bf16.msra.mxu0 0
        %1455 = vmatpush.bf16.msra.mxu0 0
        %1456 = vmatpush.bf16.msra.mxu0 0
        %1457 = vmatpush.bf16.msra.mxu0 0
        %1458 = vmatpush.bf16.msra.mxu0 %v1446
        %1459 = vmatmul.bf16.gmra.mxu0 %v1449
        %v1460 = vpop.f32.mrf.mxu0
        %v1461 = vadd.f32 %v1440, %v1460
        %v1462 = vpop.f32.mrf.mxu0
        %v1463 = vadd.f32 %v1440, %v1462
        %1464 = vdwg.mxu0
        %v1465 = vpack.c.bf16 %v1461, %v1461
        %v1466 = vpack.c.bf16 %v1463, %v1463
        %1467 = vst [vmem:[%s694] sm:$0xf] %v1465
        %1468 = vst [vmem:[%s694 + $0x4] sm:$0xf] %v1466
        %v1469 = vld [vmem:[%s11] sm:$0xf]
        %v1470 = vld [vmem:[%s11 + $0x4] sm:$0xf]
        %v1471 = vld [vmem:[%s11 + $0x8] sm:$0xf]
        %v1472 = vld [vmem:[%s11 + $0xc] sm:$0xf]
        %v1473 = vld [vmem:[%s11 + $0x10] sm:$0xf]
        %v1474 = vld [vmem:[%s11 + $0x14] sm:$0xf]
        %v1475 = vld [vmem:[%s11 + $0x18] sm:$0xf]
        %v1476 = vld [vmem:[%s11 + $0x1c] sm:$0xf]
        %v1477 = vld [vmem:[%s11 + $0x20] sm:$0xf]
        %v1478 = vld [vmem:[%s11 + $0x24] sm:$0xf]
        %v1479 = vld [vmem:[%s11 + $0x28] sm:$0xf]
        %v1480 = vld [vmem:[%s11 + $0x2c] sm:$0xf]
        %v1481 = vld [vmem:[%s11 + $0x30] sm:$0xf]
        %v1482 = vld [vmem:[%s11 + $0x34] sm:$0xf]
        %v1483 = vld [vmem:[%s11 + $0x38] sm:$0xf]
        %v1484 = vld [vmem:[%s11 + $0x3c] sm:$0xf]
        %v1485 = vld [vmem:[%s12] sm:$0x1]
        %v1487 = vperm.slane %v1485, 0
        %v1491 = vunpack.c.l.b16 %v1465
        %v1492 = vunpack.c.l.b16 %v1466
        %v1493 = vpack.c.b16 %v1492, %v1491
        %v1511 = vunpack.c.l.b16 %v1469
        %v1512 = vunpack.c.l.b16 %v1470
        %v1513 = vunpack.c.l.b16 %v1471
        %v1514 = vunpack.c.l.b16 %v1472
        %v1515 = vunpack.c.l.b16 %v1473
        %v1516 = vunpack.c.l.b16 %v1474
        %v1517 = vunpack.c.l.b16 %v1475
        %v1518 = vunpack.c.l.b16 %v1476
        %v1519 = vunpack.c.l.b16 %v1477
        %v1520 = vunpack.c.l.b16 %v1478
        %v1521 = vunpack.c.l.b16 %v1479
        %v1522 = vunpack.c.l.b16 %v1480
        %v1523 = vunpack.c.l.b16 %v1481
        %v1524 = vunpack.c.l.b16 %v1482
        %v1525 = vunpack.c.l.b16 %v1483
        %v1526 = vunpack.c.l.b16 %v1484
        %v1527 = vpack.c.b16 %v1512, %v1511
        %v1528 = vpack.c.b16 %v1514, %v1513
        %v1529 = vpack.c.b16 %v1516, %v1515
        %v1530 = vpack.c.b16 %v1518, %v1517
        %v1531 = vpack.c.b16 %v1520, %v1519
        %v1532 = vpack.c.b16 %v1522, %v1521
        %v1533 = vpack.c.b16 %v1524, %v1523
        %v1534 = vpack.c.b16 %v1526, %v1525
        %1543 = vmatpush.bf16.msra.mxu0 %v1534
        %1544 = vmatpush.bf16.msra.mxu0 %v1533
        %1545 = vmatpush.bf16.msra.mxu0 %v1532
        %1546 = vmatpush.bf16.msra.mxu0 %v1531
        %1547 = vmatpush.bf16.msra.mxu0 %v1530
        %1548 = vmatpush.bf16.msra.mxu0 %v1529
        %1549 = vmatpush.bf16.msra.mxu0 %v1528
        %1550 = vmatpush.bf16.msra.mxu0 %v1527
        %1551 = vmatmul.bf16.gmra.mxu0 %v1493
        %v1552 = vpop.f32.mrf.mxu0
        %v1553 = vadd.f32 %v1487, %v1552
        %v1554 = vpop.f32.mrf.mxu0
        %v1555 = vadd.f32 %v1487, %v1554
        %1556 = vdwg.mxu0
        %v1557 = vtanh.pop %v1553
        %v1558 = vtanh.pop %v1555
        %v1559 = vpack.c.bf16 %v1558, %v1557
        %v1560 = vld [vmem:[%s13] sm:$0xf]
        %v1561 = vld [vmem:[%s13 + $0x4] sm:$0xf]
        %v1562 = vld [vmem:[%s14] sm:$0x1]
        %v1564 = vperm.slane %v1562, 0
        %v1568 = vunpack.c.l.b16 %v1560
        %v1569 = vunpack.c.l.b16 %v1561
        %v1570 = vpack.c.b16 %v1569, %v1568
        %v1573 = vsel %vm1148, %v1559, 0
        %1575 = vmatpush.bf16.msra.mxu0 0
        %1576 = vmatpush.bf16.msra.mxu0 0
        %1577 = vmatpush.bf16.msra.mxu0 0
        %1578 = vmatpush.bf16.msra.mxu0 0
        %1579 = vmatpush.bf16.msra.mxu0 0
        %1580 = vmatpush.bf16.msra.mxu0 0
        %1581 = vmatpush.bf16.msra.mxu0 0
        %1582 = vmatpush.bf16.msra.mxu0 %v1570
        %1583 = vmatmul.bf16.gmra.mxu0 %v1573
        %v1584 = vpop.f32.mrf.mxu0
        %v1585 = vadd.f32 %v1564, %v1584
        %v1586 = vpop.f32.mrf.mxu0
        %v1587 = vadd.f32 %v1564, %v1586
        %1588 = vdwg.mxu0
        %v1589 = vtanh.pop %v1585
        %v1590 = vtanh.pop %v1587
        %v1591 = vpack.c.bf16 %v1590, %v1589
        %v1592 = vld [vmem:[%s15] sm:$0xf]
        %v1593 = vld [vmem:[%s15 + $0x4] sm:$0xf]
        %v1594 = vld [vmem:[%s15 + $0x8] sm:$0xf]
        %v1595 = vld [vmem:[%s15 + $0xc] sm:$0xf]
        %v1596 = vld [vmem:[%s16] sm:$0x1]
        %v1598 = vperm.slane %v1596, 0
        %v1604 = vunpack.c.l.b16 %v1592
        %v1605 = vunpack.c.l.b16 %v1593
        %v1606 = vunpack.c.l.b16 %v1594
        %v1607 = vunpack.c.l.b16 %v1595
        %v1608 = vpack.c.b16 %v1605, %v1604
        %v1609 = vpack.c.b16 %v1607, %v1606
        %v1613 = vsel %vm1415, %v1591, 0
        %1615 = vmatpush.bf16.msra.mxu0 0
        %1616 = vmatpush.bf16.msra.mxu0 0
        %1617 = vmatpush.bf16.msra.mxu0 0
        %1618 = vmatpush.bf16.msra.mxu0 0
        %1619 = vmatpush.bf16.msra.mxu0 0
        %1620 = vmatpush.bf16.msra.mxu0 0
        %1621 = vmatpush.bf16.msra.mxu0 %v1609
        %1622 = vmatpush.bf16.msra.mxu0 %v1608
        %1623 = vmatmul.bf16.gmra.mxu0 %v1613
        %v1624 = vpop.f32.mrf.mxu0
        %v1625 = vadd.f32 %v1598, %v1624
        %v1626 = vpop.f32.mrf.mxu0
        %v1627 = vadd.f32 %v1598, %v1626
        %1628 = vdwg.mxu0
        %v1629 = vtanh.pop %v1625
        %v1630 = vtanh.pop %v1627
        %v1631 = vpack.c.bf16 %v1630, %v1629
        %v1632 = vld [vmem:[%s17] sm:$0xf]
        %v1633 = vld [vmem:[%s17 + $0x4] sm:$0xf]
        %v1634 = vld [vmem:[%s17 + $0x8] sm:$0xf]
        %v1635 = vld [vmem:[%s17 + $0xc] sm:$0xf]
        %v1636 = vld [vmem:[%s17 + $0x10] sm:$0xf]
        %v1637 = vld [vmem:[%s17 + $0x14] sm:$0xf]
        %v1638 = vld [vmem:[%s17 + $0x18] sm:$0xf]
        %v1639 = vld [vmem:[%s17 + $0x1c] sm:$0xf]
        %v1640 = vld [vmem:[%s18] sm:$0x1]
        %v1642 = vperm.slane %v1640, 0
        %v1652 = vunpack.c.l.b16 %v1632
        %v1653 = vunpack.c.l.b16 %v1633
        %v1654 = vunpack.c.l.b16 %v1634
        %v1655 = vunpack.c.l.b16 %v1635
        %v1656 = vunpack.c.l.b16 %v1636
        %v1657 = vunpack.c.l.b16 %v1637
        %v1658 = vunpack.c.l.b16 %v1638
        %v1659 = vunpack.c.l.b16 %v1639
        %v1660 = vpack.c.b16 %v1653, %v1652
        %v1661 = vpack.c.b16 %v1655, %v1654
        %v1662 = vpack.c.b16 %v1657, %v1656
        %v1663 = vpack.c.b16 %v1659, %v1658
        %v1669 = vsel %vm1374, %v1631, 0
        %1671 = vmatpush.bf16.msra.mxu0 0
        %1672 = vmatpush.bf16.msra.mxu0 0
        %1673 = vmatpush.bf16.msra.mxu0 0
        %1674 = vmatpush.bf16.msra.mxu0 0
        %1675 = vmatpush.bf16.msra.mxu0 %v1663
        %1676 = vmatpush.bf16.msra.mxu0 %v1662
        %1677 = vmatpush.bf16.msra.mxu0 %v1661
        %1678 = vmatpush.bf16.msra.mxu0 %v1660
        %1679 = vmatmul.bf16.gmra.mxu0 %v1669
        %v1680 = vpop.f32.mrf.mxu0
        %v1681 = vadd.f32 %v1642, %v1680
        %v1682 = vpop.f32.mrf.mxu0
        %v1683 = vadd.f32 %v1642, %v1682
        %1684 = vdwg.mxu0
        %v1685 = vtanh.pop %v1681
        %v1686 = vtanh.pop %v1683
        %v1687 = vpack.c.bf16 %v1686, %v1685
        %v1688 = vld [vmem:[%s19] sm:$0xff]
        %v1689 = vld [vmem:[%s19 + $0x8] sm:$0xff]
        %v1690 = vld [vmem:[%s19 + $0x10] sm:$0xff]
        %v1691 = vld [vmem:[%s19 + $0x18] sm:$0xf]
        %v1692 = vld [vmem:[%s19 + $0x1c] sm:$0xff]
        %v1693 = vld [vmem:[%s19 + $0x24] sm:$0xff]
        %v1694 = vld [vmem:[%s19 + $0x2c] sm:$0xff]
        %v1695 = vld [vmem:[%s19 + $0x34] sm:$0xf]
        %v1696 = vld [vmem:[%s19 + $0x38] sm:$0xff]
        %v1697 = vld [vmem:[%s19 + $0x40] sm:$0xff]
        %v1698 = vld [vmem:[%s19 + $0x48] sm:$0xff]
        %v1699 = vld [vmem:[%s19 + $0x50] sm:$0xf]
        %v1700 = vld [vmem:[%s19 + $0x54] sm:$0xff]
        %v1701 = vld [vmem:[%s19 + $0x5c] sm:$0xff]
        %v1702 = vld [vmem:[%s19 + $0x64] sm:$0xff]
        %v1703 = vld [vmem:[%s19 + $0x6c] sm:$0xf]
        %v1704 = vld [vmem:[%s19 + $0x70] sm:$0xff]
        %v1705 = vld [vmem:[%s19 + $0x78] sm:$0xff]
        %v1706 = vld [vmem:[%s19 + $0x80] sm:$0xff]
        %v1707 = vld [vmem:[%s19 + $0x88] sm:$0xf]
        %v1708 = vld [vmem:[%s19 + $0x8c] sm:$0xff]
        %v1709 = vld [vmem:[%s19 + $0x94] sm:$0xff]
        %v1710 = vld [vmem:[%s19 + $0x9c] sm:$0xff]
        %v1711 = vld [vmem:[%s19 + $0xa4] sm:$0xf]
        %v1712 = vld [vmem:[%s19 + $0xa8] sm:$0xff]
        %v1713 = vld [vmem:[%s19 + $0xb0] sm:$0xff]
        %v1714 = vld [vmem:[%s19 + $0xb8] sm:$0xff]
        %v1715 = vld [vmem:[%s19 + $0xc0] sm:$0xf]
        %v1716 = vld [vmem:[%s19 + $0xc4] sm:$0xff]
        %v1717 = vld [vmem:[%s19 + $0xcc] sm:$0xff]
        %v1718 = vld [vmem:[%s19 + $0xd4] sm:$0xff]
        %v1719 = vld [vmem:[%s19 + $0xdc] sm:$0xf]
        %v1720 = vld [vmem:[%s19 + $0xe0] sm:$0xff]
        %v1721 = vld [vmem:[%s19 + $0xe8] sm:$0xff]
        %v1722 = vld [vmem:[%s19 + $0xf0] sm:$0xff]
        %v1723 = vld [vmem:[%s19 + $0xf8] sm:$0xf]
        %v1724 = vld [vmem:[%s19 + $0xfc] sm:$0xff]
        %v1725 = vld [vmem:[%s19 + $0x104] sm:$0xff]
        %v1726 = vld [vmem:[%s19 + $0x10c] sm:$0xff]
        %v1727 = vld [vmem:[%s19 + $0x114] sm:$0xf]
        %v1728 = vld [vmem:[%s19 + $0x118] sm:$0xff]
        %v1729 = vld [vmem:[%s19 + $0x120] sm:$0xff]
        %v1730 = vld [vmem:[%s19 + $0x128] sm:$0xff]
        %v1731 = vld [vmem:[%s19 + $0x130] sm:$0xf]
        %v1732 = vld [vmem:[%s19 + $0x134] sm:$0xff]
        %v1733 = vld [vmem:[%s19 + $0x13c] sm:$0xff]
        %v1734 = vld [vmem:[%s19 + $0x144] sm:$0xff]
        %v1735 = vld [vmem:[%s19 + $0x14c] sm:$0xf]
        %v1736 = vld [vmem:[%s19 + $0x150] sm:$0xff]
        %v1737 = vld [vmem:[%s19 + $0x158] sm:$0xff]
        %v1738 = vld [vmem:[%s19 + $0x160] sm:$0xff]
        %v1739 = vld [vmem:[%s19 + $0x168] sm:$0xf]
        %v1740 = vld [vmem:[%s19 + $0x16c] sm:$0xff]
        %v1741 = vld [vmem:[%s19 + $0x174] sm:$0xff]
        %v1742 = vld [vmem:[%s19 + $0x17c] sm:$0xff]
        %v1743 = vld [vmem:[%s19 + $0x184] sm:$0xf]
        %v1744 = vld [vmem:[%s19 + $0x188] sm:$0xff]
        %v1745 = vld [vmem:[%s19 + $0x190] sm:$0xff]
        %v1746 = vld [vmem:[%s19 + $0x198] sm:$0xff]
        %v1747 = vld [vmem:[%s19 + $0x1a0] sm:$0xf]
        %v1748 = vld [vmem:[%s19 + $0x1a4] sm:$0xff]
        %v1749 = vld [vmem:[%s19 + $0x1ac] sm:$0xff]
        %v1750 = vld [vmem:[%s19 + $0x1b4] sm:$0xff]
        %v1751 = vld [vmem:[%s19 + $0x1bc] sm:$0xf]
        %v1752 = vld [vmem:[%s20] sm:$0x7f]
        %v1754 = vperm.slane %v1752, 0
        %v1755 = vperm.slane %v1752, 1
        %v1756 = vperm.slane %v1752, 2
        %v1757 = vperm.slane %v1752, 3
        %v1758 = vperm.slane %v1752, 4
        %v1759 = vperm.slane %v1752, 5
        %v1760 = vperm.slane %v1752, 6
        %v1832 = vunpack.c.l.b16 %v1688
        %v1833 = vunpack.c.h.b16 %v1688
        %v1834 = vunpack.c.l.b16 %v1689
        %v1835 = vunpack.c.h.b16 %v1689
        %v1836 = vunpack.c.l.b16 %v1690
        %v1837 = vunpack.c.h.b16 %v1690
        %v1838 = vunpack.c.l.b16 %v1691
        %v1839 = vunpack.c.l.b16 %v1692
        %v1840 = vunpack.c.h.b16 %v1692
        %v1841 = vunpack.c.l.b16 %v1693
        %v1842 = vunpack.c.h.b16 %v1693
        %v1843 = vunpack.c.l.b16 %v1694
        %v1844 = vunpack.c.h.b16 %v1694
        %v1845 = vunpack.c.l.b16 %v1695
        %v1846 = vunpack.c.l.b16 %v1696
        %v1847 = vunpack.c.h.b16 %v1696
        %v1848 = vunpack.c.l.b16 %v1697
        %v1849 = vunpack.c.h.b16 %v1697
        %v1850 = vunpack.c.l.b16 %v1698
        %v1851 = vunpack.c.h.b16 %v1698
        %v1852 = vunpack.c.l.b16 %v1699
        %v1853 = vunpack.c.l.b16 %v1700
        %v1854 = vunpack.c.h.b16 %v1700
        %v1855 = vunpack.c.l.b16 %v1701
        %v1856 = vunpack.c.h.b16 %v1701
        %v1857 = vunpack.c.l.b16 %v1702
        %v1858 = vunpack.c.h.b16 %v1702
        %v1859 = vunpack.c.l.b16 %v1703
        %v1860 = vunpack.c.l.b16 %v1704
        %v1861 = vunpack.c.h.b16 %v1704
        %v1862 = vunpack.c.l.b16 %v1705
        %v1863 = vunpack.c.h.b16 %v1705
        %v1864 = vunpack.c.l.b16 %v1706
        %v1865 = vunpack.c.h.b16 %v1706
        %v1866 = vunpack.c.l.b16 %v1707
        %v1867 = vunpack.c.l.b16 %v1708
        %v1868 = vunpack.c.h.b16 %v1708
        %v1869 = vunpack.c.l.b16 %v1709
        %v1870 = vunpack.c.h.b16 %v1709
        %v1871 = vunpack.c.l.b16 %v1710
        %v1872 = vunpack.c.h.b16 %v1710
        %v1873 = vunpack.c.l.b16 %v1711
        %v1874 = vunpack.c.l.b16 %v1712
        %v1875 = vunpack.c.h.b16 %v1712
        %v1876 = vunpack.c.l.b16 %v1713
        %v1877 = vunpack.c.h.b16 %v1713
        %v1878 = vunpack.c.l.b16 %v1714
        %v1879 = vunpack.c.h.b16 %v1714
        %v1880 = vunpack.c.l.b16 %v1715
        %v1881 = vunpack.c.l.b16 %v1716
        %v1882 = vunpack.c.h.b16 %v1716
        %v1883 = vunpack.c.l.b16 %v1717
        %v1884 = vunpack.c.h.b16 %v1717
        %v1885 = vunpack.c.l.b16 %v1718
        %v1886 = vunpack.c.h.b16 %v1718
        %v1887 = vunpack.c.l.b16 %v1719
        %v1888 = vunpack.c.l.b16 %v1720
        %v1889 = vunpack.c.h.b16 %v1720
        %v1890 = vunpack.c.l.b16 %v1721
        %v1891 = vunpack.c.h.b16 %v1721
        %v1892 = vunpack.c.l.b16 %v1722
        %v1893 = vunpack.c.h.b16 %v1722
        %v1894 = vunpack.c.l.b16 %v1723
        %v1895 = vunpack.c.l.b16 %v1724
        %v1896 = vunpack.c.h.b16 %v1724
        %v1897 = vunpack.c.l.b16 %v1725
        %v1898 = vunpack.c.h.b16 %v1725
        %v1899 = vunpack.c.l.b16 %v1726
        %v1900 = vunpack.c.h.b16 %v1726
        %v1901 = vunpack.c.l.b16 %v1727
        %v1902 = vunpack.c.l.b16 %v1728
        %v1903 = vunpack.c.h.b16 %v1728
        %v1904 = vunpack.c.l.b16 %v1729
        %v1905 = vunpack.c.h.b16 %v1729
        %v1906 = vunpack.c.l.b16 %v1730
        %v1907 = vunpack.c.h.b16 %v1730
        %v1908 = vunpack.c.l.b16 %v1731
        %v1909 = vunpack.c.l.b16 %v1732
        %v1910 = vunpack.c.h.b16 %v1732
        %v1911 = vunpack.c.l.b16 %v1733
        %v1912 = vunpack.c.h.b16 %v1733
        %v1913 = vunpack.c.l.b16 %v1734
        %v1914 = vunpack.c.h.b16 %v1734
        %v1915 = vunpack.c.l.b16 %v1735
        %v1916 = vunpack.c.l.b16 %v1736
        %v1917 = vunpack.c.h.b16 %v1736
        %v1918 = vunpack.c.l.b16 %v1737
        %v1919 = vunpack.c.h.b16 %v1737
        %v1920 = vunpack.c.l.b16 %v1738
        %v1921 = vunpack.c.h.b16 %v1738
        %v1922 = vunpack.c.l.b16 %v1739
        %v1923 = vunpack.c.l.b16 %v1740
        %v1924 = vunpack.c.h.b16 %v1740
        %v1925 = vunpack.c.l.b16 %v1741
        %v1926 = vunpack.c.h.b16 %v1741
        %v1927 = vunpack.c.l.b16 %v1742
        %v1928 = vunpack.c.h.b16 %v1742
        %v1929 = vunpack.c.l.b16 %v1743
        %v1930 = vunpack.c.l.b16 %v1744
        %v1931 = vunpack.c.h.b16 %v1744
        %v1932 = vunpack.c.l.b16 %v1745
        %v1933 = vunpack.c.h.b16 %v1745
        %v1934 = vunpack.c.l.b16 %v1746
        %v1935 = vunpack.c.h.b16 %v1746
        %v1936 = vunpack.c.l.b16 %v1747
        %v1937 = vunpack.c.l.b16 %v1748
        %v1938 = vunpack.c.h.b16 %v1748
        %v1939 = vunpack.c.l.b16 %v1749
        %v1940 = vunpack.c.h.b16 %v1749
        %v1941 = vunpack.c.l.b16 %v1750
        %v1942 = vunpack.c.h.b16 %v1750
        %v1943 = vunpack.c.l.b16 %v1751
        %v1944 = vpack.c.b16 %v1839, %v1832
        %v1945 = vpack.c.b16 %v1840, %v1833
        %v1946 = vpack.c.b16 %v1841, %v1834
        %v1947 = vpack.c.b16 %v1842, %v1835
        %v1948 = vpack.c.b16 %v1843, %v1836
        %v1949 = vpack.c.b16 %v1844, %v1837
        %v1950 = vpack.c.b16 %v1845, %v1838
        %v1951 = vpack.c.b16 %v1853, %v1846
        %v1952 = vpack.c.b16 %v1854, %v1847
        %v1953 = vpack.c.b16 %v1855, %v1848
        %v1954 = vpack.c.b16 %v1856, %v1849
        %v1955 = vpack.c.b16 %v1857, %v1850
        %v1956 = vpack.c.b16 %v1858, %v1851
        %v1957 = vpack.c.b16 %v1859, %v1852
        %v1958 = vpack.c.b16 %v1867, %v1860
        %v1959 = vpack.c.b16 %v1868, %v1861
        %v1960 = vpack.c.b16 %v1869, %v1862
        %v1961 = vpack.c.b16 %v1870, %v1863
        %v1962 = vpack.c.b16 %v1871, %v1864
        %v1963 = vpack.c.b16 %v1872, %v1865
        %v1964 = vpack.c.b16 %v1873, %v1866
        %v1965 = vpack.c.b16 %v1881, %v1874
        %v1966 = vpack.c.b16 %v1882, %v1875
        %v1967 = vpack.c.b16 %v1883, %v1876
        %v1968 = vpack.c.b16 %v1884, %v1877
        %v1969 = vpack.c.b16 %v1885, %v1878
        %v1970 = vpack.c.b16 %v1886, %v1879
        %v1971 = vpack.c.b16 %v1887, %v1880
        %v1972 = vpack.c.b16 %v1895, %v1888
        %v1973 = vpack.c.b16 %v1896, %v1889
        %v1974 = vpack.c.b16 %v1897, %v1890
        %v1975 = vpack.c.b16 %v1898, %v1891
        %v1976 = vpack.c.b16 %v1899, %v1892
        %v1977 = vpack.c.b16 %v1900, %v1893
        %v1978 = vpack.c.b16 %v1901, %v1894
        %v1979 = vpack.c.b16 %v1909, %v1902
        %v1980 = vpack.c.b16 %v1910, %v1903
        %v1981 = vpack.c.b16 %v1911, %v1904
        %v1982 = vpack.c.b16 %v1912, %v1905
        %v1983 = vpack.c.b16 %v1913, %v1906
        %v1984 = vpack.c.b16 %v1914, %v1907
        %v1985 = vpack.c.b16 %v1915, %v1908
        %v1986 = vpack.c.b16 %v1923, %v1916
        %v1987 = vpack.c.b16 %v1924, %v1917
        %v1988 = vpack.c.b16 %v1925, %v1918
        %v1989 = vpack.c.b16 %v1926, %v1919
        %v1990 = vpack.c.b16 %v1927, %v1920
        %v1991 = vpack.c.b16 %v1928, %v1921
        %v1992 = vpack.c.b16 %v1929, %v1922
        %v1993 = vpack.c.b16 %v1937, %v1930
        %v1994 = vpack.c.b16 %v1938, %v1931
        %v1995 = vpack.c.b16 %v1939, %v1932
        %v1996 = vpack.c.b16 %v1940, %v1933
        %v1997 = vpack.c.b16 %v1941, %v1934
        %v1998 = vpack.c.b16 %v1942, %v1935
        %v1999 = vpack.c.b16 %v1943, %v1936
        %2056 = vmatpush.bf16.msra.mxu0 %v1993
        %2057 = vmatpush.bf16.msra.mxu0 %v1986
        %2058 = vmatpush.bf16.msra.mxu0 %v1979
        %2059 = vmatpush.bf16.msra.mxu0 %v1972
        %2060 = vmatpush.bf16.msra.mxu0 %v1965
        %2061 = vmatpush.bf16.msra.mxu0 %v1958
        %2062 = vmatpush.bf16.msra.mxu0 %v1951
        %2063 = vmatpush.bf16.msra.mxu0 %v1944
        %2064 = vmatmul.bf16.gmra.mxu0 %v1687
        %v2065 = vpop.f32.mrf.mxu0
        %v2066 = vadd.f32 %v1754, %v2065
        %v2067 = vpop.f32.mrf.mxu0
        %v2068 = vadd.f32 %v1754, %v2067
        %2069 = vdwg.mxu0
        %2070 = vmatpush.bf16.msra.mxu0 %v1994
        %2071 = vmatpush.bf16.msra.mxu0 %v1987
        %2072 = vmatpush.bf16.msra.mxu0 %v1980
        %2073 = vmatpush.bf16.msra.mxu0 %v1973
        %2074 = vmatpush.bf16.msra.mxu0 %v1966
        %2075 = vmatpush.bf16.msra.mxu0 %v1959
        %2076 = vmatpush.bf16.msra.mxu0 %v1952
        %2077 = vmatpush.bf16.msra.mxu0 %v1945
        %2078 = vmatmul.bf16.gmra.mxu0 %v1687
        %v2079 = vpop.f32.mrf.mxu0
        %v2080 = vadd.f32 %v1755, %v2079
        %v2081 = vpop.f32.mrf.mxu0
        %v2082 = vadd.f32 %v1755, %v2081
        %2083 = vdwg.mxu0
        %2084 = vmatpush.bf16.msra.mxu0 %v1995
        %2085 = vmatpush.bf16.msra.mxu0 %v1988
        %2086 = vmatpush.bf16.msra.mxu0 %v1981
        %2087 = vmatpush.bf16.msra.mxu0 %v1974
        %2088 = vmatpush.bf16.msra.mxu0 %v1967
        %2089 = vmatpush.bf16.msra.mxu0 %v1960
        %2090 = vmatpush.bf16.msra.mxu0 %v1953
        %2091 = vmatpush.bf16.msra.mxu0 %v1946
        %2092 = vmatmul.bf16.gmra.mxu0 %v1687
        %v2093 = vpop.f32.mrf.mxu0
        %v2094 = vadd.f32 %v1756, %v2093
        %v2095 = vpop.f32.mrf.mxu0
        %v2096 = vadd.f32 %v1756, %v2095
        %2097 = vdwg.mxu0
        %2098 = vmatpush.bf16.msra.mxu0 %v1996
        %2099 = vmatpush.bf16.msra.mxu0 %v1989
        %2100 = vmatpush.bf16.msra.mxu0 %v1982
        %2101 = vmatpush.bf16.msra.mxu0 %v1975
        %2102 = vmatpush.bf16.msra.mxu0 %v1968
        %2103 = vmatpush.bf16.msra.mxu0 %v1961
        %2104 = vmatpush.bf16.msra.mxu0 %v1954
        %2105 = vmatpush.bf16.msra.mxu0 %v1947
        %2106 = vmatmul.bf16.gmra.mxu0 %v1687
        %v2107 = vpop.f32.mrf.mxu0
        %v2108 = vadd.f32 %v1757, %v2107
        %v2109 = vpop.f32.mrf.mxu0
        %v2110 = vadd.f32 %v1757, %v2109
        %2111 = vdwg.mxu0
        %2112 = vmatpush.bf16.msra.mxu0 %v1997
        %2113 = vmatpush.bf16.msra.mxu0 %v1990
        %2114 = vmatpush.bf16.msra.mxu0 %v1983
        %2115 = vmatpush.bf16.msra.mxu0 %v1976
        %2116 = vmatpush.bf16.msra.mxu0 %v1969
        %2117 = vmatpush.bf16.msra.mxu0 %v1962
        %2118 = vmatpush.bf16.msra.mxu0 %v1955
        %2119 = vmatpush.bf16.msra.mxu0 %v1948
        %2120 = vmatmul.bf16.gmra.mxu0 %v1687
        %v2121 = vpop.f32.mrf.mxu0
        %v2122 = vadd.f32 %v1758, %v2121
        %v2123 = vpop.f32.mrf.mxu0
        %v2124 = vadd.f32 %v1758, %v2123
        %2125 = vdwg.mxu0
        %2126 = vmatpush.bf16.msra.mxu0 %v1998
        %2127 = vmatpush.bf16.msra.mxu0 %v1991
        %2128 = vmatpush.bf16.msra.mxu0 %v1984
        %2129 = vmatpush.bf16.msra.mxu0 %v1977
        %2130 = vmatpush.bf16.msra.mxu0 %v1970
        %2131 = vmatpush.bf16.msra.mxu0 %v1963
        %2132 = vmatpush.bf16.msra.mxu0 %v1956
        %2133 = vmatpush.bf16.msra.mxu0 %v1949
        %2134 = vmatmul.bf16.gmra.mxu0 %v1687
        %v2135 = vpop.f32.mrf.mxu0
        %v2136 = vadd.f32 %v1759, %v2135
        %v2137 = vpop.f32.mrf.mxu0
        %v2138 = vadd.f32 %v1759, %v2137
        %2139 = vdwg.mxu0
        %2140 = vmatpush.bf16.msra.mxu0 %v1999
        %2141 = vmatpush.bf16.msra.mxu0 %v1992
        %2142 = vmatpush.bf16.msra.mxu0 %v1985
        %2143 = vmatpush.bf16.msra.mxu0 %v1978
        %2144 = vmatpush.bf16.msra.mxu0 %v1971
        %2145 = vmatpush.bf16.msra.mxu0 %v1964
        %2146 = vmatpush.bf16.msra.mxu0 %v1957
        %2147 = vmatpush.bf16.msra.mxu0 %v1950
        %2148 = vmatmul.bf16.gmra.mxu0 %v1687
        %v2149 = vpop.f32.mrf.mxu0
        %v2150 = vadd.f32 %v1760, %v2149
        %v2151 = vpop.f32.mrf.mxu0
        %v2152 = vadd.f32 %v1760, %v2151
        %2153 = vdwg.mxu0
        %v2154 = vmul.f32 %v2066, 0.5
        %v2155 = vmul.f32 %v2080, 0.5
        %v2156 = vmul.f32 %v2094, 0.5
        %v2157 = vmul.f32 %v2108, 0.5
        %v2158 = vmul.f32 %v2122, 0.5
        %v2159 = vmul.f32 %v2136, 0.5
        %v2160 = vmul.f32 %v2150, 0.5
        %v2161 = vmul.f32 %v2068, 0.5
        %v2162 = vmul.f32 %v2082, 0.5
        %v2163 = vmul.f32 %v2096, 0.5
        %v2164 = vmul.f32 %v2110, 0.5
        %v2165 = vmul.f32 %v2124, 0.5
        %v2166 = vmul.f32 %v2138, 0.5
        %v2167 = vmul.f32 %v2152, 0.5
        %v2168 = vtanh.pop %v2154
        %v2169 = vtanh.pop %v2155
        %v2170 = vtanh.pop %v2156
        %v2171 = vtanh.pop %v2157
        %v2172 = vtanh.pop %v2158
        %v2173 = vtanh.pop %v2159
        %v2174 = vtanh.pop %v2160
        %v2175 = vtanh.pop %v2161
        %v2176 = vtanh.pop %v2162
        %v2177 = vtanh.pop %v2163
        %v2178 = vtanh.pop %v2164
        %v2179 = vtanh.pop %v2165
        %v2180 = vtanh.pop %v2166
        %v2181 = vtanh.pop %v2167
        %v2182 = vmul.f32 %v2168, 0.5
        %v2183 = vmul.f32 %v2169, 0.5
        %v2184 = vmul.f32 %v2170, 0.5
        %v2185 = vmul.f32 %v2171, 0.5
        %v2186 = vmul.f32 %v2172, 0.5
        %v2187 = vmul.f32 %v2173, 0.5
        %v2188 = vmul.f32 %v2174, 0.5
        %v2189 = vmul.f32 %v2175, 0.5
        %v2190 = vmul.f32 %v2176, 0.5
        %v2191 = vmul.f32 %v2177, 0.5
        %v2192 = vmul.f32 %v2178, 0.5
        %v2193 = vmul.f32 %v2179, 0.5
        %v2194 = vmul.f32 %v2180, 0.5
        %v2195 = vmul.f32 %v2181, 0.5
        %v2196 = vadd.f32 %v2182, 0.5
        %v2197 = vadd.f32 %v2183, 0.5
        %v2198 = vadd.f32 %v2184, 0.5
        %v2199 = vadd.f32 %v2185, 0.5
        %v2200 = vadd.f32 %v2186, 0.5
        %v2201 = vadd.f32 %v2187, 0.5
        %v2202 = vadd.f32 %v2188, 0.5
        %v2203 = vadd.f32 %v2189, 0.5
        %v2204 = vadd.f32 %v2190, 0.5
        %v2205 = vadd.f32 %v2191, 0.5
        %v2206 = vadd.f32 %v2192, 0.5
        %v2207 = vadd.f32 %v2193, 0.5
        %v2208 = vadd.f32 %v2194, 0.5
        %v2209 = vadd.f32 %v2195, 0.5
        %v2210 = vpack.c.bf16 %v2197, %v2196
        %v2211 = vpack.c.bf16 %v2199, %v2198
        %v2212 = vpack.c.bf16 %v2201, %v2200
        %v2213 = vpack.c.bf16 %v2202, %v2202
        %v2214 = vpack.c.bf16 %v2204, %v2203
        %v2215 = vpack.c.bf16 %v2206, %v2205
        %v2216 = vpack.c.bf16 %v2208, %v2207
        %v2217 = vpack.c.bf16 %v2209, %v2209
        %2218 = vst [vmem:[%s701] sm:$0xff] %v2210
        %2219 = vst [vmem:[%s701 + $0x8] sm:$0xff] %v2211
        %2220 = vst [vmem:[%s701 + $0x10] sm:$0xff] %v2212
        %vm2221 = vcmask 125952
        %2222 = vst.msk [vmem:[%s701 + $0x18] sm:$0xf] %vm2221, %v2213
        %2223 = vst [vmem:[%s701 + $0x1c] sm:$0xff] %v2214
        %2224 = vst [vmem:[%s701 + $0x24] sm:$0xff] %v2215
        %2225 = vst [vmem:[%s701 + $0x2c] sm:$0xff] %v2216
        %2226 = vst.msk [vmem:[%s701 + $0x34] sm:$0xf] %vm2221, %v2217
        %s2227 = sand.u32 %s491, 1
        %s2228 = sand.u32 %s491, 1
        %s2229 = smul.addr %s2228, 8
        %s2230 = scalar_lea.vmem [#allocation2], %s2229
        %s2231 = sand.u32 %s517, 1
        %s2232 = scalar_lea.sflag [#allocation4], %s2231
        %s2233 = sand.u32 %s517, 1
        %s2234 = smul.addr %s2233, 56
        %s2235 = scalar_lea.vmem [#allocation3], %s2234
        // Predicated region
        $region105: #{autoencoder_mnist.1} parent=103 // pred_check
          %p2236 = pneg %p501
        $region106: #{autoencoder_mnist.1} parent=103 // pred_check_branch
          %2238 = sbr.rel (%p2236) target = $region108
        $region107: #{autoencoder_mnist.1} parent=103 // pred_region
          %s2239 = smul.u32 2, %s37
          %s2240 = ssub.s32 3, %s2239
          %p2241 = scmp.lt.s32.totalorder %s2240, 2
          %s2242 = scalar_select %p2241, %s2240, 2
          %s2243 = smul.u32 4, %s2242
          %p2244 = scmp.ne.s32.totalorder 0, %s2243
          %s2245 = smul.addr %s2239, 4
          %s2246 = scalar_lea.vmem %s21, %s2245
          // Predicated region
          $region109: #{autoencoder_mnist.1} parent=107 // pred_check
            %p2247 = pneg %p2244
          $region110: #{autoencoder_mnist.1} parent=107 // pred_check_branch
            %2249 = sbr.rel (%p2247) target = $region112
          $region111: #{autoencoder_mnist.1} parent=107 // pred_region
            // Predicated region
            $region113: #{autoencoder_mnist.1} parent=111 // pred_check
              _
            $region114: #{autoencoder_mnist.1} parent=111 // pred_check_branch
              %2251 = sbr.rel target = $region116
            $region115: #{autoencoder_mnist.1} parent=111 // pred_region
              // Predicated region
              $region135: #{autoencoder_mnist.1} parent=115 // pred_check
                _
              $region136: #{autoencoder_mnist.1} parent=115 // pred_check_branch
                %2303 = sbr.rel (0) target = $region138
              $region137: #{autoencoder_mnist.1} parent=115 // pred_region
                %s2305 = ssub.s32 16, 1
                %s2306 = sshrl.u32 %s2242, 1
                // While loop
                $region139: #{autoencoder_mnist.1} parent=137 // loop_pre_header
                  _
                $region140: #{autoencoder_mnist.1} parent=137 // loop_header
                  %s2308 = sphi 0, %s2310
                  %p2309 = scmp.ge.s32.totalorder %s2308, %s2306
                  %s2313 = sphi 0, %s2322
                  %s2314 = sphi %s2230, %s2325
                  %s2315 = sphi %s2246, %s2326
                $region141: #{autoencoder_mnist.1} parent=137 // loop_header_branch
                  %2312 = sbr.rel (%p2309) target = $region145
                $region142: #{autoencoder_mnist.1} parent=137 // loop_body
                  %v2316 = vld [vmem:[%s2314] sm:%s2305]
                  %2317 = vst [vmem:[%s2315] sm:%s2305] %v2316
                  %v2318 = vld [vmem:[%s2314 + $0x4] sm:%s2305]
                  %2319 = vst [vmem:[%s2315 + $0x4] sm:%s2305] %v2318
                  %s2320 = sadd.s32 1, %s2313
                  %p2321 = scmp.ge.s32.totalorder %s2320, %s2306
                  %s2322 = scalar_select %p2321, 0, %s2320
                  %s2323 = smul.u32 %s2322, 8
                  %s2324 = smul.u32 %s2322, 8
                  %s2325 = scalar_lea.vmem %s2230, %s2323 [#allocation2]
                  %s2326 = scalar_lea.vmem %s2246, %s2324
                $region143: #{autoencoder_mnist.1} parent=137 // loop_footer
                  %s2310 = sadd.s32 %s2308, 1
                $region144: #{autoencoder_mnist.1} parent=137 // loop_footer_branch
                  %2307 = sbr.rel target = $region140
                $region145: #{autoencoder_mnist.1} parent=137 // loop_exit
                  _
                %s2327 = sshrl.u32 %s2242, 1
                %s2328 = sand.u32 %s2242, 1
                %s2329 = smul.u32 %s2327, 2
                %s2330 = smul.u32 4, %s2329
                %s2331 = scalar_lea.vmem %s2230, %s2330 [#allocation2]
                %s2332 = smul.u32 4, %s2329
                %s2333 = scalar_lea.vmem %s2246, %s2332
                // While loop
                $region146: #{autoencoder_mnist.1} parent=137 // loop_pre_header
                  _
                $region147: #{autoencoder_mnist.1} parent=137 // loop_header
                  %s2335 = sphi 0, %s2337
                  %p2336 = scmp.ge.s32.totalorder %s2335, %s2328
                  %s2340 = sphi 0, %s2347
                  %s2341 = sphi %s2331, %s2350
                  %s2342 = sphi %s2333, %s2351
                $region148: #{autoencoder_mnist.1} parent=137 // loop_header_branch
                  %2339 = sbr.rel (%p2336) target = $region152
                $region149: #{autoencoder_mnist.1} parent=137 // loop_body
                  %v2343 = vld [vmem:[%s2341] sm:%s2305]
                  %2344 = vst [vmem:[%s2342] sm:%s2305] %v2343
                  %s2345 = sadd.s32 1, %s2340
                  %p2346 = scmp.ge.s32.totalorder %s2345, %s2328
                  %s2347 = scalar_select %p2346, 0, %s2345
                  %s2348 = smul.u32 %s2347, 4
                  %s2349 = smul.u32 %s2347, 4
                  %s2350 = scalar_lea.vmem %s2331, %s2348 [#allocation2]
                  %s2351 = scalar_lea.vmem %s2333, %s2349
                $region150: #{autoencoder_mnist.1} parent=137 // loop_footer
                  %s2337 = sadd.s32 %s2335, 1
                $region151: #{autoencoder_mnist.1} parent=137 // loop_footer_branch
                  %2334 = sbr.rel target = $region147
                $region152: #{autoencoder_mnist.1} parent=137 // loop_exit
                  _
              $region138: #{autoencoder_mnist.1} parent=115 // pred_fallthru
                _
            $region116: #{autoencoder_mnist.1} parent=111 // pred_fallthru
              _
            // Predicated region
            $region117: #{autoencoder_mnist.1} parent=111 // pred_check
              _
            $region118: #{autoencoder_mnist.1} parent=111 // pred_check_branch
              %2253 = sbr.rel (0) target = $region120
            $region119: #{autoencoder_mnist.1} parent=111 // pred_region
              %s2255 = ssub.s32 16, 1
              %s2256 = sshrl.u32 %s2242, 1
              // While loop
              $region121: #{autoencoder_mnist.1} parent=119 // loop_pre_header
                _
              $region122: #{autoencoder_mnist.1} parent=119 // loop_header
                %s2258 = sphi 0, %s2260
                %p2259 = scmp.ge.s32.totalorder %s2258, %s2256
                %s2263 = sphi 0, %s2272
                %s2264 = sphi %s2230, %s2275
                %s2265 = sphi %s2246, %s2276
              $region123: #{autoencoder_mnist.1} parent=119 // loop_header_branch
                %2262 = sbr.rel (%p2259) target = $region127
              $region124: #{autoencoder_mnist.1} parent=119 // loop_body
                %v2266 = vld [vmem:[%s2264] sm:%s2255]
                %2267 = vst [vmem:[%s2265] sm:%s2255] %v2266
                %v2268 = vld [vmem:[%s2264 + $0x4] sm:%s2255]
                %2269 = vst [vmem:[%s2265 + $0x4] sm:%s2255] %v2268
                %s2270 = sadd.s32 1, %s2263
                %p2271 = scmp.ge.s32.totalorder %s2270, %s2256
                %s2272 = scalar_select %p2271, 0, %s2270
                %s2273 = smul.u32 %s2272, 8
                %s2274 = smul.u32 %s2272, 8
                %s2275 = scalar_lea.vmem %s2230, %s2273 [#allocation2]
                %s2276 = scalar_lea.vmem %s2246, %s2274
              $region125: #{autoencoder_mnist.1} parent=119 // loop_footer
                %s2260 = sadd.s32 %s2258, 1
              $region126: #{autoencoder_mnist.1} parent=119 // loop_footer_branch
                %2257 = sbr.rel target = $region122
              $region127: #{autoencoder_mnist.1} parent=119 // loop_exit
                _
              %s2277 = sshrl.u32 %s2242, 1
              %s2278 = sand.u32 %s2242, 1
              %s2279 = smul.u32 %s2277, 2
              %s2280 = smul.u32 4, %s2279
              %s2281 = scalar_lea.vmem %s2230, %s2280 [#allocation2]
              %s2282 = smul.u32 4, %s2279
              %s2283 = scalar_lea.vmem %s2246, %s2282
              // While loop
              $region128: #{autoencoder_mnist.1} parent=119 // loop_pre_header
                _
              $region129: #{autoencoder_mnist.1} parent=119 // loop_header
                %s2285 = sphi 0, %s2287
                %p2286 = scmp.ge.s32.totalorder %s2285, %s2278
                %s2290 = sphi 0, %s2297
                %s2291 = sphi %s2281, %s2300
                %s2292 = sphi %s2283, %s2301
              $region130: #{autoencoder_mnist.1} parent=119 // loop_header_branch
                %2289 = sbr.rel (%p2286) target = $region134
              $region131: #{autoencoder_mnist.1} parent=119 // loop_body
                %v2293 = vld [vmem:[%s2291] sm:%s2255]
                %2294 = vst [vmem:[%s2292] sm:%s2255] %v2293
                %s2295 = sadd.s32 1, %s2290
                %p2296 = scmp.ge.s32.totalorder %s2295, %s2278
                %s2297 = scalar_select %p2296, 0, %s2295
                %s2298 = smul.u32 %s2297, 4
                %s2299 = smul.u32 %s2297, 4
                %s2300 = scalar_lea.vmem %s2281, %s2298 [#allocation2]
                %s2301 = scalar_lea.vmem %s2283, %s2299
              $region132: #{autoencoder_mnist.1} parent=119 // loop_footer
                %s2287 = sadd.s32 %s2285, 1
              $region133: #{autoencoder_mnist.1} parent=119 // loop_footer_branch
                %2284 = sbr.rel target = $region129
              $region134: #{autoencoder_mnist.1} parent=119 // loop_exit
                _
            $region120: #{autoencoder_mnist.1} parent=111 // pred_fallthru
              _
          $region112: #{autoencoder_mnist.1} parent=107 // pred_fallthru
            _
          %2352 = vnop
        $region108: #{autoencoder_mnist.1} parent=103 // pred_fallthru
          _
        // Predicated region
        $region153: #{autoencoder_mnist.1} parent=103 // pred_check
          %p2353 = pneg %p527
        $region154: #{autoencoder_mnist.1} parent=103 // pred_check_branch
          %2355 = sbr.rel (%p2353) target = $region156
        $region155: #{autoencoder_mnist.1} parent=103 // pred_region
          %s2356 = smul.u32 2, %s37
          %s2357 = ssub.s32 3, %s2356
          %p2358 = scmp.lt.s32.totalorder %s2357, 2
          %s2359 = scalar_select %p2358, %s2357, 2
          %s2360 = smul.u32 4, %s2359
          %s2361 = smul.u32 %s2360, 7
          %s2362 = ssub.s32 56, %s2361
          %s2363 = sshll.u32 %s2362, 4
          %2364 = vsyncadd %s2232, %s2363
          %p2365 = scmp.ne.s32.totalorder 0, %s2361
          %s2366 = smul.addr %s2356, 7
          %s2367 = smul.addr %s2366, 4
          %s2368 = scalar_lea.hbm %s22, %s2367
          %s2369 = smul.u32 28, %s2359
          %s2370 = sshll.u32 %s2235, 4
          %s2371 = int_to_ptr.vmem [resolvable:$true] %s2370
          %s2372 = sshll.u32 %s2368, 4
          %s2373 = int_to_ptr.hbm [resolvable:$true] %s2372
          %s2374 = sshll.u32 %s2369, 4
          %2378 = dma.vmem_to_hbm [thread:$0]  (%p2365), %s2371, %s2374, %s2373, %s2232, 448, 448, 28
        $region156: #{autoencoder_mnist.1} parent=103 // pred_fallthru
          _
      $region104: #{autoencoder_mnist.1} parent=5 // pred_fallthru
        _
      %p2379 = scmp.le.s32.totalorder 2, %s32
      // Predicated region
      $region157: #{autoencoder_mnist.1} parent=5 // pred_check
        %p2380 = pneg %p2379
      $region158: #{autoencoder_mnist.1} parent=5 // pred_check_branch
        %2382 = sbr.rel (%p2380) target = $region160
      $region159: #{autoencoder_mnist.1} parent=5 // pred_region
        %s2383 = ssub.s32 %s32, 2
        // Predicated region
        $region161: #{autoencoder_mnist.1} parent=159 // pred_check
          %p2384 = pneg %p507
        $region162: #{autoencoder_mnist.1} parent=159 // pred_check_branch
          %2386 = sbr.rel (%p2384) target = $region164
        $region163: #{autoencoder_mnist.1} parent=159 // pred_region
          %s2387 = sand.u32 %s492, 1
          %s2388 = sand.u32 %s492, 1
          %s2389 = smul.addr %s2388, 8
          %s2390 = scalar_lea.vmem [#allocation2], %s2389
        $region164: #{autoencoder_mnist.1} parent=159 // pred_fallthru
          _
        // Predicated region
        $region165: #{autoencoder_mnist.1} parent=159 // pred_check
          %p2391 = pneg %p533
        $region166: #{autoencoder_mnist.1} parent=159 // pred_check_branch
          %2393 = sbr.rel (%p2391) target = $region168
        $region167: #{autoencoder_mnist.1} parent=159 // pred_region
          %s2394 = sand.u32 %s518, 1
          %s2395 = scalar_lea.sflag [#allocation4], %s2394
          %s2396 = sand.u32 %s518, 1
          %s2397 = smul.addr %s2396, 56
          %s2398 = scalar_lea.vmem [#allocation3], %s2397
          %2400 = dma.done %s2395, 896
        $region168: #{autoencoder_mnist.1} parent=159 // pred_fallthru
          _
      $region160: #{autoencoder_mnist.1} parent=5 // pred_fallthru
        _
    $region6: #{autoencoder_mnist.1} parent=1 // loop_footer
      %s36 = sadd.s32 1, %s32
    $region7: #{autoencoder_mnist.1} parent=1 // loop_footer_branch
      %31 = sbr.rel target = $region3
    $region8: #{autoencoder_mnist.1} parent=1 // loop_exit
      _
    %2401 = vsyncpa [#allocation4], 1
    %s2402 = scalar_lea.sflag [#allocation4], 1
    %2403 = vsyncpa %s2402, 1

</llo_original>
